<compile_context>
chip_gen: v6e
topology: v6e:2x2x1
jax: 0.10.0
libtpu: 0.0.40
codegen_flags: <defaults>
</compile_context>

<pallas_src>
import math

import jax
import jax.numpy as jnp
from jax import lax
from jax.experimental import pallas as pl
from jax.experimental.pallas import tpu as pltpu

LANE = 128


# ----------------------------------------------------------------------------
# Kernel: one chunk of TT LSTM steps per grid iteration.
# ----------------------------------------------------------------------------
def _lstm_chunk_kernel(x_ref, h0_ref, c0_ref, wx_ref, wh_ref, b_ref,
                       hs_ref, hT_ref, cT_ref,
                       xproj_scr, h_scr, c_scr):
    n = pl.program_id(0)
    B, Hp = h_scr.shape
    TT = x_ref.shape[0] // B

    # Initialize the recurrent state once; it lives in VMEM scratch across
    # all grid steps (chunks).
    @pl.when(n == 0)
    def _():
        h_scr[...] = h0_ref[...]
        c_scr[...] = c0_ref[...]

    mxu_dtype = wx_ref.dtype

    # One MXU-filling batched input projection per chunk, bias folded in:
    #   (TT*B, I) @ (I, 4Hp) + b  ->  VMEM scratch (TT*B, 4Hp), f32.
    xproj_scr[...] = (
        jnp.dot(x_ref[...].astype(mxu_dtype), wx_ref[...],
                preferred_element_type=jnp.float32)
        + b_ref[...])

    wh = wh_ref[...]  # resident recurrent weight, loaded once per chunk

    def step(tt, carry):
        row = pl.multiple_of(tt * B, B)
        h = h_scr[...].astype(mxu_dtype)
        # Only h @ Wh is on the serial critical path.
        states = xproj_scr[pl.ds(row, B), :] + jnp.dot(
            h, wh, preferred_element_type=jnp.float32)

        # Lane-aligned gate slices (Hp is a multiple of 128).
        i_gate = jax.nn.sigmoid(states[:, 0 * Hp:1 * Hp])
        f_gate = jax.nn.sigmoid(states[:, 1 * Hp:2 * Hp])
        g_gate = jnp.tanh(states[:, 2 * Hp:3 * Hp])
        o_gate = jax.nn.sigmoid(states[:, 3 * Hp:4 * Hp])

        c_new = f_gate * c_scr[...] + i_gate * g_gate
        h_new = o_gate * jnp.tanh(c_new)

        h_scr[...] = h_new
        c_scr[...] = c_new
        # Per-step output: h only (lane-dense, unmasked stores).
        hs_ref[pl.ds(row, B), :] = h_new.astype(hs_ref.dtype)
        return carry

    lax.fori_loop(0, TT, step, 0, unroll=True)

    # Final state (constant block index -> written back to HBM once).
    hT_ref[...] = h_scr[...].astype(hT_ref.dtype)
    cT_ref[...] = c_scr[...].astype(cT_ref.dtype)


# ----------------------------------------------------------------------------
# One-time parameter layout (do this OUTSIDE any time loop / per-step jit).
# ----------------------------------------------------------------------------
def prepare_lstm_params(weight, bias, input_size, hidden_size,
                        param_dtype=jnp.float32):
    """Split the PyTorch (4H, I+H) weight and lay it out lane-dense.

    Returns (wx_p (I, 4*Hp), wh_p (Hp, 4*Hp), b_p (1, 4*Hp), Hp, H) where
    Hp = H rounded up to a multiple of 128 and each gate occupies its own
    128-aligned lane block.  Padded rows/cols are zero, so padded lanes of
    h/c stay exactly zero through the recurrence.
    """
    I, H = input_size, hidden_size
    Hp = ((H + LANE - 1) // LANE) * LANE
    assert weight.shape == (4 * H, I + H)

    w_t = weight.T                       # (I+H, 4H)
    w_x = w_t[:I, :]                     # (I, 4H)
    w_h = w_t[I:, :]                     # (H, 4H)

    def pad_gate_cols(w):                # (rows, 4H) -> (rows, 4*Hp)
        rows = w.shape[0]
        w4 = w.reshape(rows, 4, H)
        w4 = jnp.pad(w4, ((0, 0), (0, 0), (0, Hp - H)))
        return w4.reshape(rows, 4 * Hp)

    wx_p = pad_gate_cols(w_x).astype(param_dtype)                     # (I, 4Hp)
    wh_p = jnp.pad(pad_gate_cols(w_h), ((0, Hp - H), (0, 0)))
    wh_p = wh_p.astype(param_dtype)                                   # (Hp, 4Hp)
    b_p = jnp.pad(bias.reshape(4, H), ((0, 0), (0, Hp - H)))
    b_p = b_p.reshape(1, 4 * Hp).astype(jnp.float32)                  # (1, 4Hp)
    return wx_p, wh_p, b_p, Hp, H


def _pick_chunk(T, tt_req):
    """Largest chunk size <= tt_req that divides T (T=8 demo -> whole seq)."""
    tt = max(1, min(tt_req, T))
    while T % tt:
        tt -= 1
    return tt


# ----------------------------------------------------------------------------
# Wrappers
# ----------------------------------------------------------------------------
def lstm_sequence_pallas(xs, h0, c0, params, *, time_chunk=8):
    """Run the LSTM cell over a (T, B, I) sequence in ONE pallas_call.

    Returns (hs, h_final, c_final): hs is (T, B, H), finals are (B, H).
    """
    wx_p, wh_p, b_p, Hp, H = params
    T, B, I = xs.shape
    TT = _pick_chunk(T, time_chunk)
    n_chunks = T // TT

    h0p = jnp.pad(h0.astype(jnp.float32), ((0, 0), (0, Hp - H)))
    c0p = jnp.pad(c0.astype(jnp.float32), ((0, 0), (0, Hp - H)))
    xs2 = xs.reshape(T * B, I).astype(jnp.float32)   # metadata-only reshape

    hs2, hT, cT = pl.pallas_call(
        _lstm_chunk_kernel,
        out_shape=(
            jax.ShapeDtypeStruct((T * B, Hp), jnp.float32),   # per-step h
            jax.ShapeDtypeStruct((B, Hp), jnp.float32),       # final h
            jax.ShapeDtypeStruct((B, Hp), jnp.float32),       # final c
        ),
        grid=(n_chunks,),
        in_specs=[
            pl.BlockSpec((TT * B, I), lambda n: (n, 0)),      # x chunk
            pl.BlockSpec((B, Hp), lambda n: (0, 0)),          # h0 (resident)
            pl.BlockSpec((B, Hp), lambda n: (0, 0)),          # c0 (resident)
            pl.BlockSpec((I, 4 * Hp), lambda n: (0, 0)),      # Wx (resident)
            pl.BlockSpec((Hp, 4 * Hp), lambda n: (0, 0)),     # Wh (resident)
            pl.BlockSpec((1, 4 * Hp), lambda n: (0, 0)),      # bias (resident)
        ],
        out_specs=(
            pl.BlockSpec((TT * B, Hp), lambda n: (n, 0)),
            pl.BlockSpec((B, Hp), lambda n: (0, 0)),
            pl.BlockSpec((B, Hp), lambda n: (0, 0)),
        ),
        scratch_shapes=[
            pltpu.VMEM((TT * B, 4 * Hp), jnp.float32),   # chunk x-projection
            pltpu.VMEM((B, Hp), jnp.float32),            # h carry
            pltpu.VMEM((B, Hp), jnp.float32),            # c carry
        ],
        compiler_params=pltpu.CompilerParams(
            dimension_semantics=("arbitrary",),
            vmem_limit_bytes=64 * 1024 * 1024,
        ),
    )(xs2, h0p, c0p, wx_p, wh_p, b_p)

    hs = hs2.reshape(T, B, Hp)
    # One cheap XLA slice over the whole output (not per step); callers that
    # can consume the Hp-padded tensors may skip this.
    return hs[:, :, :H], hT[:, :H], cT[:, :H]


def lstm_cell_pallas(x, prev_h, prev_c, params):
    """Single-step forward matching MyLSTMCell.forward: returns (h, c)."""
    _, hT, cT = lstm_sequence_pallas(x[None], prev_h, prev_c, params,
                                     time_chunk=1)
    return hT, cT


# ----------------------------------------------------------------------------
# Pure-JAX references (mirror the PyTorch module) for verification.
# ----------------------------------------------------------------------------
def lstm_cell_ref(x, prev_h, prev_c, weight, bias):
    proj = jnp.concatenate([x, prev_h], axis=1)
    states = proj @ weight.T + bias
    i, f, g, o = jnp.split(states, 4, axis=1)
    i = jax.nn.sigmoid(i)
    f = jax.nn.sigmoid(f)
    g = jnp.tanh(g)
    o = jax.nn.sigmoid(o)
    c = f * prev_c + i * g
    h = o * jnp.tanh(c)
    return h, c


def lstm_sequence_ref(xs, h0, c0, weight, bias):
    def step(carry, x):
        h, c = carry
        h, c = lstm_cell_ref(x, h, c, weight, bias)
        return (h, c), h
    (hT, cT), hs = lax.scan(step, (h0, c0), xs)
    return hs, hT, cT


# ----------------------------------------------------------------------------
if __name__ == "__main__":
    batch = 8
    input_size = 16
    hidden_size = 32
    seq_len = 8

    key = jax.random.PRNGKey(0)
    kx, kh, kc, kw, kb = jax.random.split(key, 5)

    xs = jax.random.normal(kx, (seq_len, batch, input_size), dtype=jnp.float32)
    prev_h = jax.random.normal(kh, (batch, hidden_size), dtype=jnp.float32)
    prev_c = jax.random.normal(kc, (batch, hidden_size), dtype=jnp.float32)

    # Deterministic parameter init, mirroring PyTorch's uniform(-stdv, stdv).
    stdv = 1.0 / math.sqrt(hidden_size)
    weight = jax.random.uniform(
        kw, (4 * hidden_size, input_size + hidden_size),
        minval=-stdv, maxval=stdv, dtype=jnp.float32)
    bias = jax.random.uniform(
        kb, (4 * hidden_size,), minval=-stdv, maxval=stdv, dtype=jnp.float32)

    # One-time weight layout (outside any per-step path).  For v6e/v7x,
    # pass param_dtype=jnp.bfloat16 (gate math stays f32; tolerance ~1e-2).
    params = prepare_lstm_params(weight, bias, input_size, hidden_size,
                                 param_dtype=jnp.float32)

    # --- full-sequence kernel (single chunk: grid=(1,), fori_loop over T) ---
    hs_pal, hT_pal, cT_pal = lstm_sequence_pallas(
        xs, prev_h, prev_c, params, time_chunk=seq_len)
    jax.block_until_ready((hs_pal, hT_pal, cT_pal))

    hs_ref, hT_ref, cT_ref = lstm_sequence_ref(xs, prev_h, prev_c, weight, bias)
    assert jnp.allclose(hs_pal, hs_ref, atol=1e-5, rtol=1e-5), "sequence h mismatch"
    assert jnp.allclose(hT_pal, hT_ref, atol=1e-5, rtol=1e-5), "final h mismatch"
    assert jnp.allclose(cT_pal, cT_ref, atol=1e-5, rtol=1e-5), "final c mismatch"

    # --- multi-chunk path (grid=(2,), TT=4) exercises the chunk carry ---
    hs_pal2, hT_pal2, cT_pal2 = lstm_sequence_pallas(
        xs, prev_h, prev_c, params, time_chunk=4)
    jax.block_until_ready((hs_pal2, hT_pal2, cT_pal2))
    assert jnp.allclose(hs_pal2, hs_ref, atol=1e-5, rtol=1e-5), "chunked h mismatch"
    assert jnp.allclose(cT_pal2, cT_ref, atol=1e-5, rtol=1e-5), "chunked c mismatch"

    # --- single-step forward (module semantics: (x, (h, c)) -> (h, c)) ---
    h1_pal, c1_pal = lstm_cell_pallas(xs[0], prev_h, prev_c, params)
    jax.block_until_ready((h1_pal, c1_pal))
    h1_ref, c1_ref = lstm_cell_ref(xs[0], prev_h, prev_c, weight, bias)
    assert jnp.allclose(h1_pal, h1_ref, atol=1e-5, rtol=1e-5), "step h mismatch"
    assert jnp.allclose(c1_pal, c1_ref, atol=1e-5, rtol=1e-5), "step c mismatch"

    print("KERNEL_OK")
</pallas_src>

<mosaic_0001>
module attributes {stable_mosaic.version = 11 : i64} {
  func.func @_lstm_chunk_kernel(%arg0: i32, %arg1: memref<64x16xf32, #tpu.memory_space<vmem>>, %arg2: memref<8x128xf32, #tpu.memory_space<vmem>>, %arg3: memref<8x128xf32, #tpu.memory_space<vmem>>, %arg4: memref<16x512xf32, #tpu.memory_space<vmem>>, %arg5: memref<128x512xf32, #tpu.memory_space<vmem>>, %arg6: memref<1x512xf32, #tpu.memory_space<vmem>>, %arg7: memref<64x128xf32, #tpu.memory_space<vmem>>, %arg8: memref<8x128xf32, #tpu.memory_space<vmem>>, %arg9: memref<8x128xf32, #tpu.memory_space<vmem>>, %arg10: memref<64x512xf32, #tpu.memory_space<vmem>>, %arg11: memref<8x128xf32, #tpu.memory_space<vmem>>, %arg12: memref<8x128xf32, #tpu.memory_space<vmem>>) attributes {dimension_semantics = [#tpu.dimension_semantics<arbitrary>], iteration_bounds = array<i64: 1>, scalar_prefetch = 0 : i64, scratch_operands = 3 : i64, tpu.core_type = #tpu.core_type<tc>, window_params = [{transform_indices = @transform_0, window_bounds = array<i64: 64, 16>}, {pipeline_mode = #tpu.pipeline_mode<synchronous>, transform_indices = @transform_1, window_bounds = array<i64: 8, 128>}, {pipeline_mode = #tpu.pipeline_mode<synchronous>, transform_indices = @transform_2, window_bounds = array<i64: 8, 128>}, {pipeline_mode = #tpu.pipeline_mode<synchronous>, transform_indices = @transform_3, window_bounds = array<i64: 16, 512>}, {pipeline_mode = #tpu.pipeline_mode<synchronous>, transform_indices = @transform_4, window_bounds = array<i64: 128, 512>}, {pipeline_mode = #tpu.pipeline_mode<synchronous>, transform_indices = @transform_5, window_bounds = array<i64: 1, 512>}, {transform_indices = @transform_6, window_bounds = array<i64: 64, 128>}, {pipeline_mode = #tpu.pipeline_mode<synchronous>, transform_indices = @transform_7, window_bounds = array<i64: 8, 128>}, {pipeline_mode = #tpu.pipeline_mode<synchronous>, transform_indices = @transform_8, window_bounds = array<i64: 8, 128>}]} {
    %c0_i32 = arith.constant 0 : i32
    %0 = arith.cmpi eq, %arg0, %c0_i32 : i32
    %1 = arith.extui %0 : i1 to i32
    %c0_i32_0 = arith.constant 0 : i32
    %2 = arith.cmpi ne, %1, %c0_i32_0 : i32
    scf.if %2 {
      %c0_139 = arith.constant 0 : index
      %c0_140 = arith.constant 0 : index
      %311 = vector.load %arg2[%c0_139, %c0_140] : memref<8x128xf32, #tpu.memory_space<vmem>>, vector<8x128xf32>
      %c0_141 = arith.constant 0 : index
      %c0_142 = arith.constant 0 : index
      %312 = vector.load %arg11[%c0_141, %c0_142] : memref<8x128xf32, #tpu.memory_space<vmem>>, vector<8x128xf32>
      tpu.vector_store %arg11[%c0_141, %c0_142], %311 {strides = array<i32>} : memref<8x128xf32, #tpu.memory_space<vmem>>, vector<8x128xf32>,
      %c0_143 = arith.constant 0 : index
      %c0_144 = arith.constant 0 : index
      %313 = vector.load %arg3[%c0_143, %c0_144] : memref<8x128xf32, #tpu.memory_space<vmem>>, vector<8x128xf32>
      %c0_145 = arith.constant 0 : index
      %c0_146 = arith.constant 0 : index
      %314 = vector.load %arg12[%c0_145, %c0_146] : memref<8x128xf32, #tpu.memory_space<vmem>>, vector<8x128xf32>
      tpu.vector_store %arg12[%c0_145, %c0_146], %313 {strides = array<i32>} : memref<8x128xf32, #tpu.memory_space<vmem>>, vector<8x128xf32>,
    } else {
    }
    %c0 = arith.constant 0 : index
    %c0_1 = arith.constant 0 : index
    %3 = vector.load %arg1[%c0, %c0_1] : memref<64x16xf32, #tpu.memory_space<vmem>>, vector<64x16xf32>
    %c0_2 = arith.constant 0 : index
    %c0_3 = arith.constant 0 : index
    %4 = vector.load %arg4[%c0_2, %c0_3] : memref<16x512xf32, #tpu.memory_space<vmem>>, vector<16x512xf32>
    %cst = arith.constant dense<0.000000e+00> : vector<64x512xf32>
    %5 = tpu.matmul %3, %4, %cst {dimension_numbers = #tpu.dot_dimension_numbers<[1], [0], [0], [1], [0, 0, 1, 1], [], []>} : vector<64x16xf32>, vector<16x512xf32>, vector<64x512xf32> -> vector<64x512xf32>
    %c0_4 = arith.constant 0 : index
    %c0_5 = arith.constant 0 : index
    %6 = vector.load %arg6[%c0_4, %c0_5] : memref<1x512xf32, #tpu.memory_space<vmem>>, vector<1x512xf32>
    %7 = vector.broadcast %6 : vector<1x512xf32> to vector<64x512xf32>
    %8 = arith.addf %5, %7 : vector<64x512xf32>
    %c0_6 = arith.constant 0 : index
    %c0_7 = arith.constant 0 : index
    %9 = vector.load %arg10[%c0_6, %c0_7] : memref<64x512xf32, #tpu.memory_space<vmem>>, vector<64x512xf32>
    tpu.vector_store %arg10[%c0_6, %c0_7], %8 {strides = array<i32>} : memref<64x512xf32, #tpu.memory_space<vmem>>, vector<64x512xf32>,
    %c0_8 = arith.constant 0 : index
    %c0_9 = arith.constant 0 : index
    %10 = vector.load %arg5[%c0_8, %c0_9] : memref<128x512xf32, #tpu.memory_space<vmem>>, vector<128x512xf32>
    %c0_i32_10 = arith.constant 0 : i32
    %c8_i32 = arith.constant 8 : i32
    %11 = arith.muli %c0_i32_10, %c8_i32 : i32
    %12 = tpu.assume_multiple %11, 8 : i32
    %c0_11 = arith.constant 0 : index
    %c0_12 = arith.constant 0 : index
    %13 = vector.load %arg11[%c0_11, %c0_12] : memref<8x128xf32, #tpu.memory_space<vmem>>, vector<8x128xf32>
    %14 = arith.index_cast %12 : i32 to index
    %c0_13 = arith.constant 0 : index
    %15 = vector.load %arg10[%14, %c0_13] : memref<64x512xf32, #tpu.memory_space<vmem>>, vector<8x512xf32>
    %cst_14 = arith.constant dense<0.000000e+00> : vector<8x512xf32>
    %16 = tpu.matmul %13, %10, %cst_14 {dimension_numbers = #tpu.dot_dimension_numbers<[1], [0], [0], [1], [0, 0, 1, 1], [], []>} : vector<8x128xf32>, vector<128x512xf32>, vector<8x512xf32> -> vector<8x512xf32>
    %17 = arith.addf %15, %16 : vector<8x512xf32>
    %18 = vector.extract_strided_slice %17 {offsets = [0, 0], sizes = [8, 128], strides = [1, 1]} : vector<8x512xf32> to vector<8x128xf32>
    %19 = arith.negf %18 : vector<8x128xf32>
    %20 = math.exp %19 : vector<8x128xf32>
    %cst_15 = arith.constant 1.000000e+00 : f32
    %21 = vector.broadcast %cst_15 : f32 to vector<8x128xf32>
    %22 = arith.addf %21, %20 : vector<8x128xf32>
    %23 = arith.divf %21, %22 : vector<8x128xf32>
    %24 = vector.extract_strided_slice %17 {offsets = [0, 128], sizes = [8, 128], strides = [1, 1]} : vector<8x512xf32> to vector<8x128xf32>
    %25 = arith.negf %24 : vector<8x128xf32>
    %26 = math.exp %25 : vector<8x128xf32>
    %cst_16 = arith.constant 1.000000e+00 : f32
    %27 = vector.broadcast %cst_16 : f32 to vector<8x128xf32>
    %28 = arith.addf %27, %26 : vector<8x128xf32>
    %29 = arith.divf %27, %28 : vector<8x128xf32>
    %30 = vector.extract_strided_slice %17 {offsets = [0, 256], sizes = [8, 128], strides = [1, 1]} : vector<8x512xf32> to vector<8x128xf32>
    %31 = math.tanh %30 : vector<8x128xf32>
    %32 = vector.extract_strided_slice %17 {offsets = [0, 384], sizes = [8, 128], strides = [1, 1]} : vector<8x512xf32> to vector<8x128xf32>
    %33 = arith.negf %32 : vector<8x128xf32>
    %34 = math.exp %33 : vector<8x128xf32>
    %cst_17 = arith.constant 1.000000e+00 : f32
    %35 = vector.broadcast %cst_17 : f32 to vector<8x128xf32>
    %36 = arith.addf %35, %34 : vector<8x128xf32>
    %37 = arith.divf %35, %36 : vector<8x128xf32>
    %c0_18 = arith.constant 0 : index
    %c0_19 = arith.constant 0 : index
    %38 = vector.load %arg12[%c0_18, %c0_19] : memref<8x128xf32, #tpu.memory_space<vmem>>, vector<8x128xf32>
    %39 = arith.mulf %29, %38 : vector<8x128xf32>
    %40 = arith.mulf %23, %31 : vector<8x128xf32>
    %41 = arith.addf %39, %40 : vector<8x128xf32>
    %42 = math.tanh %41 : vector<8x128xf32>
    %43 = arith.mulf %37, %42 : vector<8x128xf32>
    %c0_20 = arith.constant 0 : index
    %c0_21 = arith.constant 0 : index
    %44 = vector.load %arg11[%c0_20, %c0_21] : memref<8x128xf32, #tpu.memory_space<vmem>>, vector<8x128xf32>
    tpu.vector_store %arg11[%c0_20, %c0_21], %43 {strides = array<i32>} : memref<8x128xf32, #tpu.memory_space<vmem>>, vector<8x128xf32>,
    %c0_22 = arith.constant 0 : index
    %c0_23 = arith.constant 0 : index
    %45 = vector.load %arg12[%c0_22, %c0_23] : memref<8x128xf32, #tpu.memory_space<vmem>>, vector<8x128xf32>
    tpu.vector_store %arg12[%c0_22, %c0_23], %41 {strides = array<i32>} : memref<8x128xf32, #tpu.memory_space<vmem>>, vector<8x128xf32>,
    %46 = arith.index_cast %12 : i32 to index
    %c0_24 = arith.constant 0 : index
    %47 = vector.load %arg7[%46, %c0_24] : memref<64x128xf32, #tpu.memory_space<vmem>>, vector<8x128xf32>
    tpu.vector_store %arg7[%46, %c0_24], %43 {strides = array<i32>} : memref<64x128xf32, #tpu.memory_space<vmem>>, vector<8x128xf32>,
    %c1_i32 = arith.constant 1 : i32
    %c8_i32_25 = arith.constant 8 : i32
    %48 = arith.muli %c1_i32, %c8_i32_25 : i32
    %49 = tpu.assume_multiple %48, 8 : i32
    %c0_26 = arith.constant 0 : index
    %c0_27 = arith.constant 0 : index
    %50 = vector.load %arg11[%c0_26, %c0_27] : memref<8x128xf32, #tpu.memory_space<vmem>>, vector<8x128xf32>
    %51 = arith.index_cast %49 : i32 to index
    %c0_28 = arith.constant 0 : index
    %52 = vector.load %arg10[%51, %c0_28] : memref<64x512xf32, #tpu.memory_space<vmem>>, vector<8x512xf32>
    %cst_29 = arith.constant dense<0.000000e+00> : vector<8x512xf32>
    %53 = tpu.matmul %50, %10, %cst_29 {dimension_numbers = #tpu.dot_dimension_numbers<[1], [0], [0], [1], [0, 0, 1, 1], [], []>} : vector<8x128xf32>, vector<128x512xf32>, vector<8x512xf32> -> vector<8x512xf32>
    %54 = arith.addf %52, %53 : vector<8x512xf32>
    %55 = vector.extract_strided_slice %54 {offsets = [0, 0], sizes = [8, 128], strides = [1, 1]} : vector<8x512xf32> to vector<8x128xf32>
    %56 = arith.negf %55 : vector<8x128xf32>
    %57 = math.exp %56 : vector<8x128xf32>
    %cst_30 = arith.constant 1.000000e+00 : f32
    %58 = vector.broadcast %cst_30 : f32 to vector<8x128xf32>
    %59 = arith.addf %58, %57 : vector<8x128xf32>
    %60 = arith.divf %58, %59 : vector<8x128xf32>
    %61 = vector.extract_strided_slice %54 {offsets = [0, 128], sizes = [8, 128], strides = [1, 1]} : vector<8x512xf32> to vector<8x128xf32>
    %62 = arith.negf %61 : vector<8x128xf32>
    %63 = math.exp %62 : vector<8x128xf32>
    %cst_31 = arith.constant 1.000000e+00 : f32
    %64 = vector.broadcast %cst_31 : f32 to vector<8x128xf32>
    %65 = arith.addf %64, %63 : vector<8x128xf32>
    %66 = arith.divf %64, %65 : vector<8x128xf32>
    %67 = vector.extract_strided_slice %54 {offsets = [0, 256], sizes = [8, 128], strides = [1, 1]} : vector<8x512xf32> to vector<8x128xf32>
    %68 = math.tanh %67 : vector<8x128xf32>
    %69 = vector.extract_strided_slice %54 {offsets = [0, 384], sizes = [8, 128], strides = [1, 1]} : vector<8x512xf32> to vector<8x128xf32>
    %70 = arith.negf %69 : vector<8x128xf32>
    %71 = math.exp %70 : vector<8x128xf32>
    %cst_32 = arith.constant 1.000000e+00 : f32
    %72 = vector.broadcast %cst_32 : f32 to vector<8x128xf32>
    %73 = arith.addf %72, %71 : vector<8x128xf32>
    %74 = arith.divf %72, %73 : vector<8x128xf32>
    %c0_33 = arith.constant 0 : index
    %c0_34 = arith.constant 0 : index
    %75 = vector.load %arg12[%c0_33, %c0_34] : memref<8x128xf32, #tpu.memory_space<vmem>>, vector<8x128xf32>
    %76 = arith.mulf %66, %75 : vector<8x128xf32>
    %77 = arith.mulf %60, %68 : vector<8x128xf32>
    %78 = arith.addf %76, %77 : vector<8x128xf32>
    %79 = math.tanh %78 : vector<8x128xf32>
    %80 = arith.mulf %74, %79 : vector<8x128xf32>
    %c0_35 = arith.constant 0 : index
    %c0_36 = arith.constant 0 : index
    %81 = vector.load %arg11[%c0_35, %c0_36] : memref<8x128xf32, #tpu.memory_space<vmem>>, vector<8x128xf32>
    tpu.vector_store %arg11[%c0_35, %c0_36], %80 {strides = array<i32>} : memref<8x128xf32, #tpu.memory_space<vmem>>, vector<8x128xf32>,
    %c0_37 = arith.constant 0 : index
    %c0_38 = arith.constant 0 : index
    %82 = vector.load %arg12[%c0_37, %c0_38] : memref<8x128xf32, #tpu.memory_space<vmem>>, vector<8x128xf32>
    tpu.vector_store %arg12[%c0_37, %c0_38], %78 {strides = array<i32>} : memref<8x128xf32, #tpu.memory_space<vmem>>, vector<8x128xf32>,
    %83 = arith.index_cast %49 : i32 to index
    %c0_39 = arith.constant 0 : index
    %84 = vector.load %arg7[%83, %c0_39] : memref<64x128xf32, #tpu.memory_space<vmem>>, vector<8x128xf32>
    tpu.vector_store %arg7[%83, %c0_39], %80 {strides = array<i32>} : memref<64x128xf32, #tpu.memory_space<vmem>>, vector<8x128xf32>,
    %c2_i32 = arith.constant 2 : i32
    %c8_i32_40 = arith.constant 8 : i32
    %85 = arith.muli %c2_i32, %c8_i32_40 : i32
    %86 = tpu.assume_multiple %85, 8 : i32
    %c0_41 = arith.constant 0 : index
    %c0_42 = arith.constant 0 : index
    %87 = vector.load %arg11[%c0_41, %c0_42] : memref<8x128xf32, #tpu.memory_space<vmem>>, vector<8x128xf32>
    %88 = arith.index_cast %86 : i32 to index
    %c0_43 = arith.constant 0 : index
    %89 = vector.load %arg10[%88, %c0_43] : memref<64x512xf32, #tpu.memory_space<vmem>>, vector<8x512xf32>
    %cst_44 = arith.constant dense<0.000000e+00> : vector<8x512xf32>
    %90 = tpu.matmul %87, %10, %cst_44 {dimension_numbers = #tpu.dot_dimension_numbers<[1], [0], [0], [1], [0, 0, 1, 1], [], []>} : vector<8x128xf32>, vector<128x512xf32>, vector<8x512xf32> -> vector<8x512xf32>
    %91 = arith.addf %89, %90 : vector<8x512xf32>
    %92 = vector.extract_strided_slice %91 {offsets = [0, 0], sizes = [8, 128], strides = [1, 1]} : vector<8x512xf32> to vector<8x128xf32>
    %93 = arith.negf %92 : vector<8x128xf32>
    %94 = math.exp %93 : vector<8x128xf32>
    %cst_45 = arith.constant 1.000000e+00 : f32
    %95 = vector.broadcast %cst_45 : f32 to vector<8x128xf32>
    %96 = arith.addf %95, %94 : vector<8x128xf32>
    %97 = arith.divf %95, %96 : vector<8x128xf32>
    %98 = vector.extract_strided_slice %91 {offsets = [0, 128], sizes = [8, 128], strides = [1, 1]} : vector<8x512xf32> to vector<8x128xf32>
    %99 = arith.negf %98 : vector<8x128xf32>
    %100 = math.exp %99 : vector<8x128xf32>
    %cst_46 = arith.constant 1.000000e+00 : f32
    %101 = vector.broadcast %cst_46 : f32 to vector<8x128xf32>
    %102 = arith.addf %101, %100 : vector<8x128xf32>
    %103 = arith.divf %101, %102 : vector<8x128xf32>
    %104 = vector.extract_strided_slice %91 {offsets = [0, 256], sizes = [8, 128], strides = [1, 1]} : vector<8x512xf32> to vector<8x128xf32>
    %105 = math.tanh %104 : vector<8x128xf32>
    %106 = vector.extract_strided_slice %91 {offsets = [0, 384], sizes = [8, 128], strides = [1, 1]} : vector<8x512xf32> to vector<8x128xf32>
    %107 = arith.negf %106 : vector<8x128xf32>
    %108 = math.exp %107 : vector<8x128xf32>
    %cst_47 = arith.constant 1.000000e+00 : f32
    %109 = vector.broadcast %cst_47 : f32 to vector<8x128xf32>
    %110 = arith.addf %109, %108 : vector<8x128xf32>
    %111 = arith.divf %109, %110 : vector<8x128xf32>
    %c0_48 = arith.constant 0 : index
    %c0_49 = arith.constant 0 : index
    %112 = vector.load %arg12[%c0_48, %c0_49] : memref<8x128xf32, #tpu.memory_space<vmem>>, vector<8x128xf32>
    %113 = arith.mulf %103, %112 : vector<8x128xf32>
    %114 = arith.mulf %97, %105 : vector<8x128xf32>
    %115 = arith.addf %113, %114 : vector<8x128xf32>
    %116 = math.tanh %115 : vector<8x128xf32>
    %117 = arith.mulf %111, %116 : vector<8x128xf32>
    %c0_50 = arith.constant 0 : index
    %c0_51 = arith.constant 0 : index
    %118 = vector.load %arg11[%c0_50, %c0_51] : memref<8x128xf32, #tpu.memory_space<vmem>>, vector<8x128xf32>
    tpu.vector_store %arg11[%c0_50, %c0_51], %117 {strides = array<i32>} : memref<8x128xf32, #tpu.memory_space<vmem>>, vector<8x128xf32>,
    %c0_52 = arith.constant 0 : index
    %c0_53 = arith.constant 0 : index
    %119 = vector.load %arg12[%c0_52, %c0_53] : memref<8x128xf32, #tpu.memory_space<vmem>>, vector<8x128xf32>
    tpu.vector_store %arg12[%c0_52, %c0_53], %115 {strides = array<i32>} : memref<8x128xf32, #tpu.memory_space<vmem>>, vector<8x128xf32>,
    %120 = arith.index_cast %86 : i32 to index
    %c0_54 = arith.constant 0 : index
    %121 = vector.load %arg7[%120, %c0_54] : memref<64x128xf32, #tpu.memory_space<vmem>>, vector<8x128xf32>
    tpu.vector_store %arg7[%120, %c0_54], %117 {strides = array<i32>} : memref<64x128xf32, #tpu.memory_space<vmem>>, vector<8x128xf32>,
    %c3_i32 = arith.constant 3 : i32
    %c8_i32_55 = arith.constant 8 : i32
    %122 = arith.muli %c3_i32, %c8_i32_55 : i32
    %123 = tpu.assume_multiple %122, 8 : i32
    %c0_56 = arith.constant 0 : index
    %c0_57 = arith.constant 0 : index
    %124 = vector.load %arg11[%c0_56, %c0_57] : memref<8x128xf32, #tpu.memory_space<vmem>>, vector<8x128xf32>
    %125 = arith.index_cast %123 : i32 to index
    %c0_58 = arith.constant 0 : index
    %126 = vector.load %arg10[%125, %c0_58] : memref<64x512xf32, #tpu.memory_space<vmem>>, vector<8x512xf32>
    %cst_59 = arith.constant dense<0.000000e+00> : vector<8x512xf32>
    %127 = tpu.matmul %124, %10, %cst_59 {dimension_numbers = #tpu.dot_dimension_numbers<[1], [0], [0], [1], [0, 0, 1, 1], [], []>} : vector<8x128xf32>, vector<128x512xf32>, vector<8x512xf32> -> vector<8x512xf32>
    %128 = arith.addf %126, %127 : vector<8x512xf32>
    %129 = vector.extract_strided_slice %128 {offsets = [0, 0], sizes = [8, 128], strides = [1, 1]} : vector<8x512xf32> to vector<8x128xf32>
    %130 = arith.negf %129 : vector<8x128xf32>
    %131 = math.exp %130 : vector<8x128xf32>
    %cst_60 = arith.constant 1.000000e+00 : f32
    %132 = vector.broadcast %cst_60 : f32 to vector<8x128xf32>
    %133 = arith.addf %132, %131 : vector<8x128xf32>
    %134 = arith.divf %132, %133 : vector<8x128xf32>
    %135 = vector.extract_strided_slice %128 {offsets = [0, 128], sizes = [8, 128], strides = [1, 1]} : vector<8x512xf32> to vector<8x128xf32>
    %136 = arith.negf %135 : vector<8x128xf32>
    %137 = math.exp %136 : vector<8x128xf32>
    %cst_61 = arith.constant 1.000000e+00 : f32
    %138 = vector.broadcast %cst_61 : f32 to vector<8x128xf32>
    %139 = arith.addf %138, %137 : vector<8x128xf32>
    %140 = arith.divf %138, %139 : vector<8x128xf32>
    %141 = vector.extract_strided_slice %128 {offsets = [0, 256], sizes = [8, 128], strides = [1, 1]} : vector<8x512xf32> to vector<8x128xf32>
    %142 = math.tanh %141 : vector<8x128xf32>
    %143 = vector.extract_strided_slice %128 {offsets = [0, 384], sizes = [8, 128], strides = [1, 1]} : vector<8x512xf32> to vector<8x128xf32>
    %144 = arith.negf %143 : vector<8x128xf32>
    %145 = math.exp %144 : vector<8x128xf32>
    %cst_62 = arith.constant 1.000000e+00 : f32
    %146 = vector.broadcast %cst_62 : f32 to vector<8x128xf32>
    %147 = arith.addf %146, %145 : vector<8x128xf32>
    %148 = arith.divf %146, %147 : vector<8x128xf32>
    %c0_63 = arith.constant 0 : index
    %c0_64 = arith.constant 0 : index
    %149 = vector.load %arg12[%c0_63, %c0_64] : memref<8x128xf32, #tpu.memory_space<vmem>>, vector<8x128xf32>
    %150 = arith.mulf %140, %149 : vector<8x128xf32>
    %151 = arith.mulf %134, %142 : vector<8x128xf32>
    %152 = arith.addf %150, %151 : vector<8x128xf32>
    %153 = math.tanh %152 : vector<8x128xf32>
    %154 = arith.mulf %148, %153 : vector<8x128xf32>
    %c0_65 = arith.constant 0 : index
    %c0_66 = arith.constant 0 : index
    %155 = vector.load %arg11[%c0_65, %c0_66] : memref<8x128xf32, #tpu.memory_space<vmem>>, vector<8x128xf32>
    tpu.vector_store %arg11[%c0_65, %c0_66], %154 {strides = array<i32>} : memref<8x128xf32, #tpu.memory_space<vmem>>, vector<8x128xf32>,
    %c0_67 = arith.constant 0 : index
    %c0_68 = arith.constant 0 : index
    %156 = vector.load %arg12[%c0_67, %c0_68] : memref<8x128xf32, #tpu.memory_space<vmem>>, vector<8x128xf32>
    tpu.vector_store %arg12[%c0_67, %c0_68], %152 {strides = array<i32>} : memref<8x128xf32, #tpu.memory_space<vmem>>, vector<8x128xf32>,
    %157 = arith.index_cast %123 : i32 to index
    %c0_69 = arith.constant 0 : index
    %158 = vector.load %arg7[%157, %c0_69] : memref<64x128xf32, #tpu.memory_space<vmem>>, vector<8x128xf32>
    tpu.vector_store %arg7[%157, %c0_69], %154 {strides = array<i32>} : memref<64x128xf32, #tpu.memory_space<vmem>>, vector<8x128xf32>,
    %c4_i32 = arith.constant 4 : i32
    %c8_i32_70 = arith.constant 8 : i32
    %159 = arith.muli %c4_i32, %c8_i32_70 : i32
    %160 = tpu.assume_multiple %159, 8 : i32
    %c0_71 = arith.constant 0 : index
    %c0_72 = arith.constant 0 : index
    %161 = vector.load %arg11[%c0_71, %c0_72] : memref<8x128xf32, #tpu.memory_space<vmem>>, vector<8x128xf32>
    %162 = arith.index_cast %160 : i32 to index
    %c0_73 = arith.constant 0 : index
    %163 = vector.load %arg10[%162, %c0_73] : memref<64x512xf32, #tpu.memory_space<vmem>>, vector<8x512xf32>
    %cst_74 = arith.constant dense<0.000000e+00> : vector<8x512xf32>
    %164 = tpu.matmul %161, %10, %cst_74 {dimension_numbers = #tpu.dot_dimension_numbers<[1], [0], [0], [1], [0, 0, 1, 1], [], []>} : vector<8x128xf32>, vector<128x512xf32>, vector<8x512xf32> -> vector<8x512xf32>
    %165 = arith.addf %163, %164 : vector<8x512xf32>
    %166 = vector.extract_strided_slice %165 {offsets = [0, 0], sizes = [8, 128], strides = [1, 1]} : vector<8x512xf32> to vector<8x128xf32>
    %167 = arith.negf %166 : vector<8x128xf32>
    %168 = math.exp %167 : vector<8x128xf32>
    %cst_75 = arith.constant 1.000000e+00 : f32
    %169 = vector.broadcast %cst_75 : f32 to vector<8x128xf32>
    %170 = arith.addf %169, %168 : vector<8x128xf32>
    %171 = arith.divf %169, %170 : vector<8x128xf32>
    %172 = vector.extract_strided_slice %165 {offsets = [0, 128], sizes = [8, 128], strides = [1, 1]} : vector<8x512xf32> to vector<8x128xf32>
    %173 = arith.negf %172 : vector<8x128xf32>
    %174 = math.exp %173 : vector<8x128xf32>
    %cst_76 = arith.constant 1.000000e+00 : f32
    %175 = vector.broadcast %cst_76 : f32 to vector<8x128xf32>
    %176 = arith.addf %175, %174 : vector<8x128xf32>
    %177 = arith.divf %175, %176 : vector<8x128xf32>
    %178 = vector.extract_strided_slice %165 {offsets = [0, 256], sizes = [8, 128], strides = [1, 1]} : vector<8x512xf32> to vector<8x128xf32>
    %179 = math.tanh %178 : vector<8x128xf32>
    %180 = vector.extract_strided_slice %165 {offsets = [0, 384], sizes = [8, 128], strides = [1, 1]} : vector<8x512xf32> to vector<8x128xf32>
    %181 = arith.negf %180 : vector<8x128xf32>
    %182 = math.exp %181 : vector<8x128xf32>
    %cst_77 = arith.constant 1.000000e+00 : f32
    %183 = vector.broadcast %cst_77 : f32 to vector<8x128xf32>
    %184 = arith.addf %183, %182 : vector<8x128xf32>
    %185 = arith.divf %183, %184 : vector<8x128xf32>
    %c0_78 = arith.constant 0 : index
    %c0_79 = arith.constant 0 : index
    %186 = vector.load %arg12[%c0_78, %c0_79] : memref<8x128xf32, #tpu.memory_space<vmem>>, vector<8x128xf32>
    %187 = arith.mulf %177, %186 : vector<8x128xf32>
    %188 = arith.mulf %171, %179 : vector<8x128xf32>
    %189 = arith.addf %187, %188 : vector<8x128xf32>
    %190 = math.tanh %189 : vector<8x128xf32>
    %191 = arith.mulf %185, %190 : vector<8x128xf32>
    %c0_80 = arith.constant 0 : index
    %c0_81 = arith.constant 0 : index
    %192 = vector.load %arg11[%c0_80, %c0_81] : memref<8x128xf32, #tpu.memory_space<vmem>>, vector<8x128xf32>
    tpu.vector_store %arg11[%c0_80, %c0_81], %191 {strides = array<i32>} : memref<8x128xf32, #tpu.memory_space<vmem>>, vector<8x128xf32>,
    %c0_82 = arith.constant 0 : index
    %c0_83 = arith.constant 0 : index
    %193 = vector.load %arg12[%c0_82, %c0_83] : memref<8x128xf32, #tpu.memory_space<vmem>>, vector<8x128xf32>
    tpu.vector_store %arg12[%c0_82, %c0_83], %189 {strides = array<i32>} : memref<8x128xf32, #tpu.memory_space<vmem>>, vector<8x128xf32>,
    %194 = arith.index_cast %160 : i32 to index
    %c0_84 = arith.constant 0 : index
    %195 = vector.load %arg7[%194, %c0_84] : memref<64x128xf32, #tpu.memory_space<vmem>>, vector<8x128xf32>
    tpu.vector_store %arg7[%194, %c0_84], %191 {strides = array<i32>} : memref<64x128xf32, #tpu.memory_space<vmem>>, vector<8x128xf32>,
    %c5_i32 = arith.constant 5 : i32
    %c8_i32_85 = arith.constant 8 : i32
    %196 = arith.muli %c5_i32, %c8_i32_85 : i32
    %197 = tpu.assume_multiple %196, 8 : i32
    %c0_86 = arith.constant 0 : index
    %c0_87 = arith.constant 0 : index
    %198 = vector.load %arg11[%c0_86, %c0_87] : memref<8x128xf32, #tpu.memory_space<vmem>>, vector<8x128xf32>
    %199 = arith.index_cast %197 : i32 to index
    %c0_88 = arith.constant 0 : index
    %200 = vector.load %arg10[%199, %c0_88] : memref<64x512xf32, #tpu.memory_space<vmem>>, vector<8x512xf32>
    %cst_89 = arith.constant dense<0.000000e+00> : vector<8x512xf32>
    %201 = tpu.matmul %198, %10, %cst_89 {dimension_numbers = #tpu.dot_dimension_numbers<[1], [0], [0], [1], [0, 0, 1, 1], [], []>} : vector<8x128xf32>, vector<128x512xf32>, vector<8x512xf32> -> vector<8x512xf32>
    %202 = arith.addf %200, %201 : vector<8x512xf32>
    %203 = vector.extract_strided_slice %202 {offsets = [0, 0], sizes = [8, 128], strides = [1, 1]} : vector<8x512xf32> to vector<8x128xf32>
    %204 = arith.negf %203 : vector<8x128xf32>
    %205 = math.exp %204 : vector<8x128xf32>
    %cst_90 = arith.constant 1.000000e+00 : f32
    %206 = vector.broadcast %cst_90 : f32 to vector<8x128xf32>
    %207 = arith.addf %206, %205 : vector<8x128xf32>
    %208 = arith.divf %206, %207 : vector<8x128xf32>
    %209 = vector.extract_strided_slice %202 {offsets = [0, 128], sizes = [8, 128], strides = [1, 1]} : vector<8x512xf32> to vector<8x128xf32>
    %210 = arith.negf %209 : vector<8x128xf32>
    %211 = math.exp %210 : vector<8x128xf32>
    %cst_91 = arith.constant 1.000000e+00 : f32
    %212 = vector.broadcast %cst_91 : f32 to vector<8x128xf32>
    %213 = arith.addf %212, %211 : vector<8x128xf32>
    %214 = arith.divf %212, %213 : vector<8x128xf32>
    %215 = vector.extract_strided_slice %202 {offsets = [0, 256], sizes = [8, 128], strides = [1, 1]} : vector<8x512xf32> to vector<8x128xf32>
    %216 = math.tanh %215 : vector<8x128xf32>
    %217 = vector.extract_strided_slice %202 {offsets = [0, 384], sizes = [8, 128], strides = [1, 1]} : vector<8x512xf32> to vector<8x128xf32>
    %218 = arith.negf %217 : vector<8x128xf32>
    %219 = math.exp %218 : vector<8x128xf32>
    %cst_92 = arith.constant 1.000000e+00 : f32
    %220 = vector.broadcast %cst_92 : f32 to vector<8x128xf32>
    %221 = arith.addf %220, %219 : vector<8x128xf32>
    %222 = arith.divf %220, %221 : vector<8x128xf32>
    %c0_93 = arith.constant 0 : index
    %c0_94 = arith.constant 0 : index
    %223 = vector.load %arg12[%c0_93, %c0_94] : memref<8x128xf32, #tpu.memory_space<vmem>>, vector<8x128xf32>
    %224 = arith.mulf %214, %223 : vector<8x128xf32>
    %225 = arith.mulf %208, %216 : vector<8x128xf32>
    %226 = arith.addf %224, %225 : vector<8x128xf32>
    %227 = math.tanh %226 : vector<8x128xf32>
    %228 = arith.mulf %222, %227 : vector<8x128xf32>
    %c0_95 = arith.constant 0 : index
    %c0_96 = arith.constant 0 : index
    %229 = vector.load %arg11[%c0_95, %c0_96] : memref<8x128xf32, #tpu.memory_space<vmem>>, vector<8x128xf32>
    tpu.vector_store %arg11[%c0_95, %c0_96], %228 {strides = array<i32>} : memref<8x128xf32, #tpu.memory_space<vmem>>, vector<8x128xf32>,
    %c0_97 = arith.constant 0 : index
    %c0_98 = arith.constant 0 : index
    %230 = vector.load %arg12[%c0_97, %c0_98] : memref<8x128xf32, #tpu.memory_space<vmem>>, vector<8x128xf32>
    tpu.vector_store %arg12[%c0_97, %c0_98], %226 {strides = array<i32>} : memref<8x128xf32, #tpu.memory_space<vmem>>, vector<8x128xf32>,
    %231 = arith.index_cast %197 : i32 to index
    %c0_99 = arith.constant 0 : index
    %232 = vector.load %arg7[%231, %c0_99] : memref<64x128xf32, #tpu.memory_space<vmem>>, vector<8x128xf32>
    tpu.vector_store %arg7[%231, %c0_99], %228 {strides = array<i32>} : memref<64x128xf32, #tpu.memory_space<vmem>>, vector<8x128xf32>,
    %c6_i32 = arith.constant 6 : i32
    %c8_i32_100 = arith.constant 8 : i32
    %233 = arith.muli %c6_i32, %c8_i32_100 : i32
    %234 = tpu.assume_multiple %233, 8 : i32
    %c0_101 = arith.constant 0 : index
    %c0_102 = arith.constant 0 : index
    %235 = vector.load %arg11[%c0_101, %c0_102] : memref<8x128xf32, #tpu.memory_space<vmem>>, vector<8x128xf32>
    %236 = arith.index_cast %234 : i32 to index
    %c0_103 = arith.constant 0 : index
    %237 = vector.load %arg10[%236, %c0_103] : memref<64x512xf32, #tpu.memory_space<vmem>>, vector<8x512xf32>
    %cst_104 = arith.constant dense<0.000000e+00> : vector<8x512xf32>
    %238 = tpu.matmul %235, %10, %cst_104 {dimension_numbers = #tpu.dot_dimension_numbers<[1], [0], [0], [1], [0, 0, 1, 1], [], []>} : vector<8x128xf32>, vector<128x512xf32>, vector<8x512xf32> -> vector<8x512xf32>
    %239 = arith.addf %237, %238 : vector<8x512xf32>
    %240 = vector.extract_strided_slice %239 {offsets = [0, 0], sizes = [8, 128], strides = [1, 1]} : vector<8x512xf32> to vector<8x128xf32>
    %241 = arith.negf %240 : vector<8x128xf32>
    %242 = math.exp %241 : vector<8x128xf32>
    %cst_105 = arith.constant 1.000000e+00 : f32
    %243 = vector.broadcast %cst_105 : f32 to vector<8x128xf32>
    %244 = arith.addf %243, %242 : vector<8x128xf32>
    %245 = arith.divf %243, %244 : vector<8x128xf32>
    %246 = vector.extract_strided_slice %239 {offsets = [0, 128], sizes = [8, 128], strides = [1, 1]} : vector<8x512xf32> to vector<8x128xf32>
    %247 = arith.negf %246 : vector<8x128xf32>
    %248 = math.exp %247 : vector<8x128xf32>
    %cst_106 = arith.constant 1.000000e+00 : f32
    %249 = vector.broadcast %cst_106 : f32 to vector<8x128xf32>
    %250 = arith.addf %249, %248 : vector<8x128xf32>
    %251 = arith.divf %249, %250 : vector<8x128xf32>
    %252 = vector.extract_strided_slice %239 {offsets = [0, 256], sizes = [8, 128], strides = [1, 1]} : vector<8x512xf32> to vector<8x128xf32>
    %253 = math.tanh %252 : vector<8x128xf32>
    %254 = vector.extract_strided_slice %239 {offsets = [0, 384], sizes = [8, 128], strides = [1, 1]} : vector<8x512xf32> to vector<8x128xf32>
    %255 = arith.negf %254 : vector<8x128xf32>
    %256 = math.exp %255 : vector<8x128xf32>
    %cst_107 = arith.constant 1.000000e+00 : f32
    %257 = vector.broadcast %cst_107 : f32 to vector<8x128xf32>
    %258 = arith.addf %257, %256 : vector<8x128xf32>
    %259 = arith.divf %257, %258 : vector<8x128xf32>
    %c0_108 = arith.constant 0 : index
    %c0_109 = arith.constant 0 : index
    %260 = vector.load %arg12[%c0_108, %c0_109] : memref<8x128xf32, #tpu.memory_space<vmem>>, vector<8x128xf32>
    %261 = arith.mulf %251, %260 : vector<8x128xf32>
    %262 = arith.mulf %245, %253 : vector<8x128xf32>
    %263 = arith.addf %261, %262 : vector<8x128xf32>
    %264 = math.tanh %263 : vector<8x128xf32>
    %265 = arith.mulf %259, %264 : vector<8x128xf32>
    %c0_110 = arith.constant 0 : index
    %c0_111 = arith.constant 0 : index
    %266 = vector.load %arg11[%c0_110, %c0_111] : memref<8x128xf32, #tpu.memory_space<vmem>>, vector<8x128xf32>
    tpu.vector_store %arg11[%c0_110, %c0_111], %265 {strides = array<i32>} : memref<8x128xf32, #tpu.memory_space<vmem>>, vector<8x128xf32>,
    %c0_112 = arith.constant 0 : index
    %c0_113 = arith.constant 0 : index
    %267 = vector.load %arg12[%c0_112, %c0_113] : memref<8x128xf32, #tpu.memory_space<vmem>>, vector<8x128xf32>
    tpu.vector_store %arg12[%c0_112, %c0_113], %263 {strides = array<i32>} : memref<8x128xf32, #tpu.memory_space<vmem>>, vector<8x128xf32>,
    %268 = arith.index_cast %234 : i32 to index
    %c0_114 = arith.constant 0 : index
    %269 = vector.load %arg7[%268, %c0_114] : memref<64x128xf32, #tpu.memory_space<vmem>>, vector<8x128xf32>
    tpu.vector_store %arg7[%268, %c0_114], %265 {strides = array<i32>} : memref<64x128xf32, #tpu.memory_space<vmem>>, vector<8x128xf32>,
    %c7_i32 = arith.constant 7 : i32
    %c8_i32_115 = arith.constant 8 : i32
    %270 = arith.muli %c7_i32, %c8_i32_115 : i32
    %271 = tpu.assume_multiple %270, 8 : i32
    %c0_116 = arith.constant 0 : index
    %c0_117 = arith.constant 0 : index
    %272 = vector.load %arg11[%c0_116, %c0_117] : memref<8x128xf32, #tpu.memory_space<vmem>>, vector<8x128xf32>
    %273 = arith.index_cast %271 : i32 to index
    %c0_118 = arith.constant 0 : index
    %274 = vector.load %arg10[%273, %c0_118] : memref<64x512xf32, #tpu.memory_space<vmem>>, vector<8x512xf32>
    %cst_119 = arith.constant dense<0.000000e+00> : vector<8x512xf32>
    %275 = tpu.matmul %272, %10, %cst_119 {dimension_numbers = #tpu.dot_dimension_numbers<[1], [0], [0], [1], [0, 0, 1, 1], [], []>} : vector<8x128xf32>, vector<128x512xf32>, vector<8x512xf32> -> vector<8x512xf32>
    %276 = arith.addf %274, %275 : vector<8x512xf32>
    %277 = vector.extract_strided_slice %276 {offsets = [0, 0], sizes = [8, 128], strides = [1, 1]} : vector<8x512xf32> to vector<8x128xf32>
    %278 = arith.negf %277 : vector<8x128xf32>
    %279 = math.exp %278 : vector<8x128xf32>
    %cst_120 = arith.constant 1.000000e+00 : f32
    %280 = vector.broadcast %cst_120 : f32 to vector<8x128xf32>
    %281 = arith.addf %280, %279 : vector<8x128xf32>
    %282 = arith.divf %280, %281 : vector<8x128xf32>
    %283 = vector.extract_strided_slice %276 {offsets = [0, 128], sizes = [8, 128], strides = [1, 1]} : vector<8x512xf32> to vector<8x128xf32>
    %284 = arith.negf %283 : vector<8x128xf32>
    %285 = math.exp %284 : vector<8x128xf32>
    %cst_121 = arith.constant 1.000000e+00 : f32
    %286 = vector.broadcast %cst_121 : f32 to vector<8x128xf32>
    %287 = arith.addf %286, %285 : vector<8x128xf32>
    %288 = arith.divf %286, %287 : vector<8x128xf32>
    %289 = vector.extract_strided_slice %276 {offsets = [0, 256], sizes = [8, 128], strides = [1, 1]} : vector<8x512xf32> to vector<8x128xf32>
    %290 = math.tanh %289 : vector<8x128xf32>
    %291 = vector.extract_strided_slice %276 {offsets = [0, 384], sizes = [8, 128], strides = [1, 1]} : vector<8x512xf32> to vector<8x128xf32>
    %292 = arith.negf %291 : vector<8x128xf32>
    %293 = math.exp %292 : vector<8x128xf32>
    %cst_122 = arith.constant 1.000000e+00 : f32
    %294 = vector.broadcast %cst_122 : f32 to vector<8x128xf32>
    %295 = arith.addf %294, %293 : vector<8x128xf32>
    %296 = arith.divf %294, %295 : vector<8x128xf32>
    %c0_123 = arith.constant 0 : index
    %c0_124 = arith.constant 0 : index
    %297 = vector.load %arg12[%c0_123, %c0_124] : memref<8x128xf32, #tpu.memory_space<vmem>>, vector<8x128xf32>
    %298 = arith.mulf %288, %297 : vector<8x128xf32>
    %299 = arith.mulf %282, %290 : vector<8x128xf32>
    %300 = arith.addf %298, %299 : vector<8x128xf32>
    %301 = math.tanh %300 : vector<8x128xf32>
    %302 = arith.mulf %296, %301 : vector<8x128xf32>
    %c0_125 = arith.constant 0 : index
    %c0_126 = arith.constant 0 : index
    %303 = vector.load %arg11[%c0_125, %c0_126] : memref<8x128xf32, #tpu.memory_space<vmem>>, vector<8x128xf32>
    tpu.vector_store %arg11[%c0_125, %c0_126], %302 {strides = array<i32>} : memref<8x128xf32, #tpu.memory_space<vmem>>, vector<8x128xf32>,
    %c0_127 = arith.constant 0 : index
    %c0_128 = arith.constant 0 : index
    %304 = vector.load %arg12[%c0_127, %c0_128] : memref<8x128xf32, #tpu.memory_space<vmem>>, vector<8x128xf32>
    tpu.vector_store %arg12[%c0_127, %c0_128], %300 {strides = array<i32>} : memref<8x128xf32, #tpu.memory_space<vmem>>, vector<8x128xf32>,
    %305 = arith.index_cast %271 : i32 to index
    %c0_129 = arith.constant 0 : index
    %306 = vector.load %arg7[%305, %c0_129] : memref<64x128xf32, #tpu.memory_space<vmem>>, vector<8x128xf32>
    tpu.vector_store %arg7[%305, %c0_129], %302 {strides = array<i32>} : memref<64x128xf32, #tpu.memory_space<vmem>>, vector<8x128xf32>,
    %c8_i32_130 = arith.constant 8 : i32
    %c0_131 = arith.constant 0 : index
    %c0_132 = arith.constant 0 : index
    %307 = vector.load %arg11[%c0_131, %c0_132] : memref<8x128xf32, #tpu.memory_space<vmem>>, vector<8x128xf32>
    %c0_133 = arith.constant 0 : index
    %c0_134 = arith.constant 0 : index
    %308 = vector.load %arg8[%c0_133, %c0_134] : memref<8x128xf32, #tpu.memory_space<vmem>>, vector<8x128xf32>
    tpu.vector_store %arg8[%c0_133, %c0_134], %307 {strides = array<i32>} : memref<8x128xf32, #tpu.memory_space<vmem>>, vector<8x128xf32>,
    %c0_135 = arith.constant 0 : index
    %c0_136 = arith.constant 0 : index
    %309 = vector.load %arg12[%c0_135, %c0_136] : memref<8x128xf32, #tpu.memory_space<vmem>>, vector<8x128xf32>
    %c0_137 = arith.constant 0 : index
    %c0_138 = arith.constant 0 : index
    %310 = vector.load %arg9[%c0_137, %c0_138] : memref<8x128xf32, #tpu.memory_space<vmem>>, vector<8x128xf32>
    tpu.vector_store %arg9[%c0_137, %c0_138], %309 {strides = array<i32>} : memref<8x128xf32, #tpu.memory_space<vmem>>, vector<8x128xf32>,
    return
  }
  func.func @transform_0(%arg0: i32) -> (i32, i32) {
    %c0_i32 = arith.constant 0 : i32
    %c0_i32_0 = arith.constant 0 : i32
    return %arg0, %c0_i32 : i32, i32
  }
  func.func @transform_1(%arg0: i32) -> (i32, i32) {
    %c0_i32 = arith.constant 0 : i32
    %c0_i32_0 = arith.constant 0 : i32
    %c0_i32_1 = arith.constant 0 : i32
    return %c0_i32, %c0_i32_0 : i32, i32
  }
  func.func @transform_2(%arg0: i32) -> (i32, i32) {
    %c0_i32 = arith.constant 0 : i32
    %c0_i32_0 = arith.constant 0 : i32
    %c0_i32_1 = arith.constant 0 : i32
    return %c0_i32, %c0_i32_0 : i32, i32
  }
  func.func @transform_3(%arg0: i32) -> (i32, i32) {
    %c0_i32 = arith.constant 0 : i32
    %c0_i32_0 = arith.constant 0 : i32
    %c0_i32_1 = arith.constant 0 : i32
    return %c0_i32, %c0_i32_0 : i32, i32
  }
  func.func @transform_4(%arg0: i32) -> (i32, i32) {
    %c0_i32 = arith.constant 0 : i32
    %c0_i32_0 = arith.constant 0 : i32
    %c0_i32_1 = arith.constant 0 : i32
    return %c0_i32, %c0_i32_0 : i32, i32
  }
  func.func @transform_5(%arg0: i32) -> (i32, i32) {
    %c0_i32 = arith.constant 0 : i32
    %c0_i32_0 = arith.constant 0 : i32
    %c0_i32_1 = arith.constant 0 : i32
    return %c0_i32, %c0_i32_0 : i32, i32
  }
  func.func @transform_6(%arg0: i32) -> (i32, i32) {
    %c0_i32 = arith.constant 0 : i32
    %c0_i32_0 = arith.constant 0 : i32
    return %arg0, %c0_i32 : i32, i32
  }
  func.func @transform_7(%arg0: i32) -> (i32, i32) {
    %c0_i32 = arith.constant 0 : i32
    %c0_i32_0 = arith.constant 0 : i32
    %c0_i32_1 = arith.constant 0 : i32
    return %c0_i32, %c0_i32_0 : i32, i32
  }
  func.func @transform_8(%arg0: i32) -> (i32, i32) {
    %c0_i32 = arith.constant 0 : i32
    %c0_i32_0 = arith.constant 0 : i32
    %c0_i32_1 = arith.constant 0 : i32
    return %c0_i32, %c0_i32_0 : i32, i32
  }
}

</mosaic_0001>

<llo_original>
// kernel: tpu_custom_call.1
$region0: #{tpu_custom_call.1}
  #allocation0 [shape = 'u32[]', space=smem, size = 0x4, offset = 0x4, fixed_abs, tag = 'smem constant byte address 0x4 - core index']
  #allocation1 [shape = 'u32[144,128]{1,0:T(1,128)}', space=vmem, size = 0x12000, scoped, tag = 'internal scratch']
  #allocation2 [shape = 'f32[64,512]{1,0:T(8,128)}', space=vmem, size = 0x20000, scoped, tag = 'scratch operand']
  #allocation3 [shape = 'f32[8,128]{1,0:T(8,128)}', space=vmem, size = 0x1000, scoped, tag = 'scratch operand']
  #allocation4 [shape = 'f32[8,128]{1,0:T(8,128)}', space=vmem, size = 0x1000, scoped, tag = 'scratch operand']
  %s0 = inlined_call_operand.vmem [shape: f32[64,16], index: 0, kind: input, shape index: {}]
  %s1 = inlined_call_operand.vmem [shape: f32[8,128], index: 1, kind: input, shape index: {}]
  %s2 = inlined_call_operand.vmem [shape: f32[8,128], index: 2, kind: input, shape index: {}]
  %s3 = inlined_call_operand.vmem [shape: f32[16,512], index: 3, kind: input, shape index: {}]
  %s4 = inlined_call_operand.hbm [shape: f32[128,512], index: 4, kind: input, shape index: {}]
  %s5 = inlined_call_operand.vmem [shape: f32[1,512], index: 5, kind: input, shape index: {}]
  %s6 = inlined_call_operand.hbm [shape: f32[64,128], index: 6, kind: output, shape index: {0}]
  %s7 = inlined_call_operand.hbm [shape: f32[8,128], index: 7, kind: output, shape index: {1}]
  %s8 = inlined_call_operand.hbm [shape: f32[8,128], index: 8, kind: output, shape index: {2}]
  %9 = xla_tuple %s6, %s7, %s8
  %s10 = sld [smem:[#allocation0]]
  $region58: #{tpu_custom_call.1} parent=0
    _
  %s12 = ssub.s32 1, %s10
  %s13 = scalar_select 0, %s12, %s10
  $region1: #{tpu_custom_call.1} parent=0
    #allocation5 [shape = 'u8[262144]{0}', space=vmem, size = 0x40000, scoped, tag = 'input window, operand 4, single buffered']
    #allocation6 [shape = 's32[1]{0}', space=sflag, size = 0x4, scoped, tag = 'scoped memory for tpu_custom_call.1']
    #allocation7 [shape = 's32[1]{0}', space=sflag, size = 0x4, scoped, tag = 'scoped memory for tpu_custom_call.1']
    #allocation8 [shape = 'u8[32768]{0}', space=vmem, size = 0x8000, scoped, tag = 'output window, operand 0, single buffered']
    #allocation9 [shape = 'u8[4096]{0}', space=vmem, size = 0x1000, scoped, tag = 'output window, operand 1, single buffered']
    #allocation10 [shape = 's32[1]{0}', space=sflag, size = 0x4, scoped, tag = 'scoped memory for tpu_custom_call.1']
    #allocation11 [shape = 'u8[4096]{0}', space=vmem, size = 0x1000, scoped, tag = 'output window, operand 2, single buffered']
    %14 = vsyncpa [#allocation6], 0
    %15 = vsyncpa [#allocation7], 0
    %16 = vsyncpa [#allocation10], 0
    // Predicated region
    $region2: #{tpu_custom_call.1} parent=1 // pred_check
      _
    $region3: #{tpu_custom_call.1} parent=1 // pred_check_branch
      %18 = sbr.rel (0) target = $region5
    $region4: #{tpu_custom_call.1} parent=1 // pred_region
      _
    $region5: #{tpu_custom_call.1} parent=1 // pred_fallthru
      _
    // Predicated region
    $region6: #{tpu_custom_call.1} parent=1 // pred_check
      _
    $region7: #{tpu_custom_call.1} parent=1 // pred_check_branch
      %20 = sbr.rel (0) target = $region9
    $region8: #{tpu_custom_call.1} parent=1 // pred_region
      _
    $region9: #{tpu_custom_call.1} parent=1 // pred_fallthru
      _
    // Predicated region
    $region10: #{tpu_custom_call.1} parent=1 // pred_check
      _
    $region11: #{tpu_custom_call.1} parent=1 // pred_check_branch
      %22 = sbr.rel (0) target = $region13
    $region12: #{tpu_custom_call.1} parent=1 // pred_region
      _
    $region13: #{tpu_custom_call.1} parent=1 // pred_fallthru
      _
    // Predicated region
    $region14: #{tpu_custom_call.1} parent=1 // pred_check
      _
    $region15: #{tpu_custom_call.1} parent=1 // pred_check_branch
      %24 = sbr.rel (0) target = $region17
    $region16: #{tpu_custom_call.1} parent=1 // pred_region
      _
    $region17: #{tpu_custom_call.1} parent=1 // pred_fallthru
      _
    // Predicated region
    $region18: #{tpu_custom_call.1} parent=1 // pred_check
      _
    $region19: #{tpu_custom_call.1} parent=1 // pred_check_branch
      %26 = sbr.rel (0) target = $region21
    $region20: #{tpu_custom_call.1} parent=1 // pred_region
      %s28 = ssub.s32 8192, 8192
      %29 = vsyncadd [#allocation6], %s28
      %s30 = sshll.u32 [#allocation5], 4
      %s31 = int_to_ptr.vmem [resolvable:$true] %s30
      %36 = dma.hbm_to_vmem [thread:$0]  %s4, 8192, %s31, [#allocation6], 512, 512, 32
    $region21: #{tpu_custom_call.1} parent=1 // pred_fallthru
      _
    // Predicated region
    $region22: #{tpu_custom_call.1} parent=1 // pred_check
      _
    $region23: #{tpu_custom_call.1} parent=1 // pred_check_branch
      %38 = sbr.rel (0) target = $region25
    $region24: #{tpu_custom_call.1} parent=1 // pred_region
      _
    $region25: #{tpu_custom_call.1} parent=1 // pred_fallthru
      _
    // Predicated region
    $region26: #{tpu_custom_call.1} parent=1 // pred_check
      _
    $region27: #{tpu_custom_call.1} parent=1 // pred_check_branch
      %40 = sbr.rel (0) target = $region29
    $region28: #{tpu_custom_call.1} parent=1 // pred_region
      %41 = dma.done [#allocation6], 8192
    $region29: #{tpu_custom_call.1} parent=1 // pred_fallthru
      _
    %p42 = scmp.eq.s32.totalorder 0, 0
    // Predicated region
    $region30: #{tpu_custom_call.1} parent=1 // pred_check
      %p43 = pneg %p42
    $region31: #{tpu_custom_call.1} parent=1 // pred_check_branch
      %45 = sbr.rel (%p43) target = $region33
    $region32: #{tpu_custom_call.1} parent=1 // pred_region
      %v46 = vld [vmem:[%s1] sm:$0xff]
      %47 = vst [vmem:[#allocation3] sm:$0xff] %v46
      %v48 = vld [vmem:[%s2] sm:$0xff]
      %49 = vst [vmem:[#allocation4] sm:$0xff] %v48
    $region33: #{tpu_custom_call.1} parent=1 // pred_fallthru
      _
    %v50 = vld [vmem:[%s0] sm:$0xff]
    %v51 = vld [vmem:[%s0 + $0x8] sm:$0xff]
    %v52 = vld [vmem:[%s0 + $0x10] sm:$0xff]
    %v53 = vld [vmem:[%s0 + $0x18] sm:$0xff]
    %v54 = vld [vmem:[%s0 + $0x20] sm:$0xff]
    %v55 = vld [vmem:[%s0 + $0x28] sm:$0xff]
    %v56 = vld [vmem:[%s0 + $0x30] sm:$0xff]
    %v57 = vld [vmem:[%s0 + $0x38] sm:$0xff]
    %v58 = vld [vmem:[%s3] sm:$0xff]
    %v59 = vld [vmem:[%s3 + $0x8] sm:$0xff]
    %v60 = vld [vmem:[%s3 + $0x10] sm:$0xff]
    %v61 = vld [vmem:[%s3 + $0x18] sm:$0xff]
    %v62 = vld [vmem:[%s3 + $0x20] sm:$0xff]
    %v63 = vld [vmem:[%s3 + $0x28] sm:$0xff]
    %v64 = vld [vmem:[%s3 + $0x30] sm:$0xff]
    %v65 = vld [vmem:[%s3 + $0x38] sm:$0xff]
    %v66 = vld [vmem:[%s5] sm:$0xf]
    %v68 = vlaneseq
    %v69 = vshrl.u32 %v68, 7
    %v70 = vsub.s32 0, %v69
    %v71 = vrot.slane %v66, %v70
    %v72 = vlaneseq
    %v73 = vshrl.u32 %v72, 7
    %v74 = vsub.s32 1, %v73
    %v75 = vrot.slane %v66, %v74
    %v76 = vlaneseq
    %v77 = vshrl.u32 %v76, 7
    %v78 = vsub.s32 2, %v77
    %v79 = vrot.slane %v66, %v78
    %v80 = vlaneseq
    %v81 = vshrl.u32 %v80, 7
    %v82 = vsub.s32 3, %v81
    %v83 = vrot.slane %v66, %v82
    %vm88 = vcmask 130048
    %v90 = vsel %vm88, %v50, 0
    %v93 = vsel %vm88, %v51, 0
    %v96 = vsel %vm88, %v52, 0
    %v99 = vsel %vm88, %v53, 0
    %v102 = vsel %vm88, %v54, 0
    %v105 = vsel %vm88, %v55, 0
    %v108 = vsel %vm88, %v56, 0
    %v111 = vsel %vm88, %v57, 0
    %113 = vmatprep.subr.mxu0 0.0
    %114 = vmatpush1.msra.mxu0 0.0
    %115 = vmatprep.subr.mxu0 0.0
    %116 = vmatpush1.msra.mxu0 0.0
    %117 = vmatprep.subr.mxu0 0.0
    %118 = vmatpush1.msra.mxu0 0.0
    %119 = vmatprep.subr.mxu0 0.0
    %120 = vmatpush1.msra.mxu0 0.0
    %121 = vmatprep.subr.mxu0 0.0
    %122 = vmatpush1.msra.mxu0 0.0
    %123 = vmatprep.subr.mxu0 0.0
    %124 = vmatpush1.msra.mxu0 0.0
    %125 = vmatprep.subr.mxu0 0.0
    %126 = vmatpush1.msra.mxu0 0.0
    %127 = vmatprep.subr.mxu0 0.0
    %128 = vmatpush1.msra.mxu0 0.0
    %129 = vmatprep.subr.mxu0 0.0
    %130 = vmatpush1.msra.mxu0 0.0
    %131 = vmatprep.subr.mxu0 0.0
    %132 = vmatpush1.msra.mxu0 0.0
    %133 = vmatprep.subr.mxu0 0.0
    %134 = vmatpush1.msra.mxu0 0.0
    %135 = vmatprep.subr.mxu0 0.0
    %136 = vmatpush1.msra.mxu0 0.0
    %137 = vmatprep.subr.mxu0 0.0
    %138 = vmatpush1.msra.mxu0 0.0
    %139 = vmatprep.subr.mxu0 0.0
    %140 = vmatpush1.msra.mxu0 0.0
    %141 = vmatprep.subr.mxu0 %v63
    %142 = vmatpush1.msra.mxu0 %v62
    %143 = vmatprep.subr.mxu0 %v59
    %144 = vmatpush1.msra.mxu0 %v58
    %145 = vmatprep.subr.mxu0 0.0
    %146 = vmatpush2.msra.mxu0 0.0
    %147 = vmatprep.subr.mxu0 0.0
    %148 = vmatpush2.msra.mxu0 0.0
    %149 = vmatprep.subr.mxu0 0.0
    %150 = vmatpush2.msra.mxu0 0.0
    %151 = vmatprep.subr.mxu0 0.0
    %152 = vmatpush2.msra.mxu0 0.0
    %153 = vmatprep.subr.mxu0 0.0
    %154 = vmatpush2.msra.mxu0 0.0
    %155 = vmatprep.subr.mxu0 0.0
    %156 = vmatpush2.msra.mxu0 0.0
    %157 = vmatprep.subr.mxu0 0.0
    %158 = vmatpush2.msra.mxu0 0.0
    %159 = vmatprep.subr.mxu0 0.0
    %160 = vmatpush2.msra.mxu0 0.0
    %161 = vmatprep.subr.mxu0 0.0
    %162 = vmatpush2.msra.mxu0 0.0
    %163 = vmatprep.subr.mxu0 0.0
    %164 = vmatpush2.msra.mxu0 0.0
    %165 = vmatprep.subr.mxu0 0.0
    %166 = vmatpush2.msra.mxu0 0.0
    %167 = vmatprep.subr.mxu0 0.0
    %168 = vmatpush2.msra.mxu0 0.0
    %169 = vmatprep.subr.mxu0 0.0
    %170 = vmatpush2.msra.mxu0 0.0
    %171 = vmatprep.subr.mxu0 0.0
    %172 = vmatpush2.msra.mxu0 0.0
    %173 = vmatprep.subr.mxu0 0.0
    %174 = vmatpush2.msra.mxu0 0.0
    %175 = vmatprep.subr.mxu0 0.0
    %176 = vmatpush2.msra.mxu0 0.0
    %177 = vmatprep.mubr.f32.mxu0 0.0
    %178 = vmatmul.mubr.f32.gmra.mxu0 %v90
    %v179 = vpop.f32.mrf.mxu0
    %v180 = vadd.f32 %v71, %v179
    %v181 = vpop.f32.mrf.mxu0
    %v182 = vadd.f32 %v75, %v181
    %183 = vmatprep.mubr.f32.mxu0 0.0
    %184 = vmatmul.mubr.f32.gmra.mxu0 %v93
    %v185 = vpop.f32.mrf.mxu0
    %v186 = vadd.f32 %v71, %v185
    %v187 = vpop.f32.mrf.mxu0
    %v188 = vadd.f32 %v75, %v187
    %189 = vmatprep.mubr.f32.mxu0 0.0
    %190 = vmatmul.mubr.f32.gmra.mxu0 %v96
    %v191 = vpop.f32.mrf.mxu0
    %v192 = vadd.f32 %v71, %v191
    %v193 = vpop.f32.mrf.mxu0
    %v194 = vadd.f32 %v75, %v193
    %195 = vmatprep.mubr.f32.mxu0 0.0
    %196 = vmatmul.mubr.f32.gmra.mxu0 %v99
    %v197 = vpop.f32.mrf.mxu0
    %v198 = vadd.f32 %v71, %v197
    %v199 = vpop.f32.mrf.mxu0
    %v200 = vadd.f32 %v75, %v199
    %201 = vmatprep.mubr.f32.mxu0 0.0
    %202 = vmatmul.mubr.f32.gmra.mxu0 %v102
    %v203 = vpop.f32.mrf.mxu0
    %v204 = vadd.f32 %v71, %v203
    %v205 = vpop.f32.mrf.mxu0
    %v206 = vadd.f32 %v75, %v205
    %207 = vmatprep.mubr.f32.mxu0 0.0
    %208 = vmatmul.mubr.f32.gmra.mxu0 %v105
    %v209 = vpop.f32.mrf.mxu0
    %v210 = vadd.f32 %v71, %v209
    %v211 = vpop.f32.mrf.mxu0
    %v212 = vadd.f32 %v75, %v211
    %213 = vmatprep.mubr.f32.mxu0 0.0
    %214 = vmatmul.mubr.f32.gmra.mxu0 %v108
    %v215 = vpop.f32.mrf.mxu0
    %v216 = vadd.f32 %v71, %v215
    %v217 = vpop.f32.mrf.mxu0
    %v218 = vadd.f32 %v75, %v217
    %219 = vmatprep.mubr.f32.mxu0 0.0
    %220 = vmatmul.mubr.f32.gmra.mxu0 %v111
    %v221 = vpop.f32.mrf.mxu0
    %v222 = vadd.f32 %v71, %v221
    %v223 = vpop.f32.mrf.mxu0
    %v224 = vadd.f32 %v75, %v223
    %225 = vdwg.mxu0
    %226 = vmatprep.subr.mxu0 0.0
    %227 = vmatpush1.msra.mxu0 0.0
    %228 = vmatprep.subr.mxu0 0.0
    %229 = vmatpush1.msra.mxu0 0.0
    %230 = vmatprep.subr.mxu0 0.0
    %231 = vmatpush1.msra.mxu0 0.0
    %232 = vmatprep.subr.mxu0 0.0
    %233 = vmatpush1.msra.mxu0 0.0
    %234 = vmatprep.subr.mxu0 0.0
    %235 = vmatpush1.msra.mxu0 0.0
    %236 = vmatprep.subr.mxu0 0.0
    %237 = vmatpush1.msra.mxu0 0.0
    %238 = vmatprep.subr.mxu0 0.0
    %239 = vmatpush1.msra.mxu0 0.0
    %240 = vmatprep.subr.mxu0 0.0
    %241 = vmatpush1.msra.mxu0 0.0
    %242 = vmatprep.subr.mxu0 0.0
    %243 = vmatpush1.msra.mxu0 0.0
    %244 = vmatprep.subr.mxu0 0.0
    %245 = vmatpush1.msra.mxu0 0.0
    %246 = vmatprep.subr.mxu0 0.0
    %247 = vmatpush1.msra.mxu0 0.0
    %248 = vmatprep.subr.mxu0 0.0
    %249 = vmatpush1.msra.mxu0 0.0
    %250 = vmatprep.subr.mxu0 0.0
    %251 = vmatpush1.msra.mxu0 0.0
    %252 = vmatprep.subr.mxu0 0.0
    %253 = vmatpush1.msra.mxu0 0.0
    %254 = vmatprep.subr.mxu0 %v65
    %255 = vmatpush1.msra.mxu0 %v64
    %256 = vmatprep.subr.mxu0 %v61
    %257 = vmatpush1.msra.mxu0 %v60
    %258 = vmatprep.subr.mxu0 0.0
    %259 = vmatpush2.msra.mxu0 0.0
    %260 = vmatprep.subr.mxu0 0.0
    %261 = vmatpush2.msra.mxu0 0.0
    %262 = vmatprep.subr.mxu0 0.0
    %263 = vmatpush2.msra.mxu0 0.0
    %264 = vmatprep.subr.mxu0 0.0
    %265 = vmatpush2.msra.mxu0 0.0
    %266 = vmatprep.subr.mxu0 0.0
    %267 = vmatpush2.msra.mxu0 0.0
    %268 = vmatprep.subr.mxu0 0.0
    %269 = vmatpush2.msra.mxu0 0.0
    %270 = vmatprep.subr.mxu0 0.0
    %271 = vmatpush2.msra.mxu0 0.0
    %272 = vmatprep.subr.mxu0 0.0
    %273 = vmatpush2.msra.mxu0 0.0
    %274 = vmatprep.subr.mxu0 0.0
    %275 = vmatpush2.msra.mxu0 0.0
    %276 = vmatprep.subr.mxu0 0.0
    %277 = vmatpush2.msra.mxu0 0.0
    %278 = vmatprep.subr.mxu0 0.0
    %279 = vmatpush2.msra.mxu0 0.0
    %280 = vmatprep.subr.mxu0 0.0
    %281 = vmatpush2.msra.mxu0 0.0
    %282 = vmatprep.subr.mxu0 0.0
    %283 = vmatpush2.msra.mxu0 0.0
    %284 = vmatprep.subr.mxu0 0.0
    %285 = vmatpush2.msra.mxu0 0.0
    %286 = vmatprep.subr.mxu0 0.0
    %287 = vmatpush2.msra.mxu0 0.0
    %288 = vmatprep.subr.mxu0 0.0
    %289 = vmatpush2.msra.mxu0 0.0
    %290 = vmatprep.mubr.f32.mxu0 0.0
    %291 = vmatmul.mubr.f32.gmra.mxu0 %v90
    %v292 = vpop.f32.mrf.mxu0
    %v293 = vadd.f32 %v79, %v292
    %v294 = vpop.f32.mrf.mxu0
    %v295 = vadd.f32 %v83, %v294
    %296 = vmatprep.mubr.f32.mxu0 0.0
    %297 = vmatmul.mubr.f32.gmra.mxu0 %v93
    %v298 = vpop.f32.mrf.mxu0
    %v299 = vadd.f32 %v79, %v298
    %v300 = vpop.f32.mrf.mxu0
    %v301 = vadd.f32 %v83, %v300
    %302 = vmatprep.mubr.f32.mxu0 0.0
    %303 = vmatmul.mubr.f32.gmra.mxu0 %v96
    %v304 = vpop.f32.mrf.mxu0
    %v305 = vadd.f32 %v79, %v304
    %v306 = vpop.f32.mrf.mxu0
    %v307 = vadd.f32 %v83, %v306
    %308 = vmatprep.mubr.f32.mxu0 0.0
    %309 = vmatmul.mubr.f32.gmra.mxu0 %v99
    %v310 = vpop.f32.mrf.mxu0
    %v311 = vadd.f32 %v79, %v310
    %v312 = vpop.f32.mrf.mxu0
    %v313 = vadd.f32 %v83, %v312
    %314 = vmatprep.mubr.f32.mxu0 0.0
    %315 = vmatmul.mubr.f32.gmra.mxu0 %v102
    %v316 = vpop.f32.mrf.mxu0
    %v317 = vadd.f32 %v79, %v316
    %v318 = vpop.f32.mrf.mxu0
    %v319 = vadd.f32 %v83, %v318
    %320 = vmatprep.mubr.f32.mxu0 0.0
    %321 = vmatmul.mubr.f32.gmra.mxu0 %v105
    %v322 = vpop.f32.mrf.mxu0
    %v323 = vadd.f32 %v79, %v322
    %v324 = vpop.f32.mrf.mxu0
    %v325 = vadd.f32 %v83, %v324
    %326 = vmatprep.mubr.f32.mxu0 0.0
    %327 = vmatmul.mubr.f32.gmra.mxu0 %v108
    %v328 = vpop.f32.mrf.mxu0
    %v329 = vadd.f32 %v79, %v328
    %v330 = vpop.f32.mrf.mxu0
    %v331 = vadd.f32 %v83, %v330
    %332 = vmatprep.mubr.f32.mxu0 0.0
    %333 = vmatmul.mubr.f32.gmra.mxu0 %v111
    %v334 = vpop.f32.mrf.mxu0
    %v335 = vadd.f32 %v79, %v334
    %v336 = vpop.f32.mrf.mxu0
    %v337 = vadd.f32 %v83, %v336
    %338 = vdwg.mxu0
    %339 = vst [vmem:[#allocation2] sm:$0xff] %v180
    %340 = vst [vmem:[#allocation2 + $0x8] sm:$0xff] %v182
    %341 = vst [vmem:[#allocation2 + $0x10] sm:$0xff] %v293
    %342 = vst [vmem:[#allocation2 + $0x18] sm:$0xff] %v295
    %343 = vst [vmem:[#allocation2 + $0x20] sm:$0xff] %v186
    %344 = vst [vmem:[#allocation2 + $0x28] sm:$0xff] %v188
    %345 = vst [vmem:[#allocation2 + $0x30] sm:$0xff] %v299
    %346 = vst [vmem:[#allocation2 + $0x38] sm:$0xff] %v301
    %347 = vst [vmem:[#allocation2 + $0x40] sm:$0xff] %v192
    %348 = vst [vmem:[#allocation2 + $0x48] sm:$0xff] %v194
    %349 = vst [vmem:[#allocation2 + $0x50] sm:$0xff] %v305
    %350 = vst [vmem:[#allocation2 + $0x58] sm:$0xff] %v307
    %351 = vst [vmem:[#allocation2 + $0x60] sm:$0xff] %v198
    %352 = vst [vmem:[#allocation2 + $0x68] sm:$0xff] %v200
    %353 = vst [vmem:[#allocation2 + $0x70] sm:$0xff] %v311
    %354 = vst [vmem:[#allocation2 + $0x78] sm:$0xff] %v313
    %355 = vst [vmem:[#allocation2 + $0x80] sm:$0xff] %v204
    %356 = vst [vmem:[#allocation2 + $0x88] sm:$0xff] %v206
    %357 = vst [vmem:[#allocation2 + $0x90] sm:$0xff] %v317
    %358 = vst [vmem:[#allocation2 + $0x98] sm:$0xff] %v319
    %359 = vst [vmem:[#allocation2 + $0xa0] sm:$0xff] %v210
    %360 = vst [vmem:[#allocation2 + $0xa8] sm:$0xff] %v212
    %361 = vst [vmem:[#allocation2 + $0xb0] sm:$0xff] %v323
    %362 = vst [vmem:[#allocation2 + $0xb8] sm:$0xff] %v325
    %363 = vst [vmem:[#allocation2 + $0xc0] sm:$0xff] %v216
    %364 = vst [vmem:[#allocation2 + $0xc8] sm:$0xff] %v218
    %365 = vst [vmem:[#allocation2 + $0xd0] sm:$0xff] %v329
    %366 = vst [vmem:[#allocation2 + $0xd8] sm:$0xff] %v331
    %367 = vst [vmem:[#allocation2 + $0xe0] sm:$0xff] %v222
    %368 = vst [vmem:[#allocation2 + $0xe8] sm:$0xff] %v224
    %369 = vst [vmem:[#allocation2 + $0xf0] sm:$0xff] %v335
    %370 = vst [vmem:[#allocation2 + $0xf8] sm:$0xff] %v337
    %v371 = vld [vmem:[#allocation5] sm:$0xff]
    %v372 = vld [vmem:[#allocation5 + $0x8] sm:$0xff]
    %v373 = vld [vmem:[#allocation5 + $0x10] sm:$0xff]
    %v374 = vld [vmem:[#allocation5 + $0x18] sm:$0xff]
    %v375 = vld [vmem:[#allocation5 + $0x20] sm:$0xff]
    %v376 = vld [vmem:[#allocation5 + $0x28] sm:$0xff]
    %v377 = vld [vmem:[#allocation5 + $0x30] sm:$0xff]
    %v378 = vld [vmem:[#allocation5 + $0x38] sm:$0xff]
    %v379 = vld [vmem:[#allocation5 + $0x40] sm:$0xff]
    %v380 = vld [vmem:[#allocation5 + $0x48] sm:$0xff]
    %v381 = vld [vmem:[#allocation5 + $0x50] sm:$0xff]
    %v382 = vld [vmem:[#allocation5 + $0x58] sm:$0xff]
    %v383 = vld [vmem:[#allocation5 + $0x60] sm:$0xff]
    %v384 = vld [vmem:[#allocation5 + $0x68] sm:$0xff]
    %v385 = vld [vmem:[#allocation5 + $0x70] sm:$0xff]
    %v386 = vld [vmem:[#allocation5 + $0x78] sm:$0xff]
    %v387 = vld [vmem:[#allocation5 + $0x80] sm:$0xff]
    %v388 = vld [vmem:[#allocation5 + $0x88] sm:$0xff]
    %v389 = vld [vmem:[#allocation5 + $0x90] sm:$0xff]
    %v390 = vld [vmem:[#allocation5 + $0x98] sm:$0xff]
    %v391 = vld [vmem:[#allocation5 + $0xa0] sm:$0xff]
    %v392 = vld [vmem:[#allocation5 + $0xa8] sm:$0xff]
    %v393 = vld [vmem:[#allocation5 + $0xb0] sm:$0xff]
    %v394 = vld [vmem:[#allocation5 + $0xb8] sm:$0xff]
    %v395 = vld [vmem:[#allocation5 + $0xc0] sm:$0xff]
    %v396 = vld [vmem:[#allocation5 + $0xc8] sm:$0xff]
    %v397 = vld [vmem:[#allocation5 + $0xd0] sm:$0xff]
    %v398 = vld [vmem:[#allocation5 + $0xd8] sm:$0xff]
    %v399 = vld [vmem:[#allocation5 + $0xe0] sm:$0xff]
    %v400 = vld [vmem:[#allocation5 + $0xe8] sm:$0xff]
    %v401 = vld [vmem:[#allocation5 + $0xf0] sm:$0xff]
    %v402 = vld [vmem:[#allocation5 + $0xf8] sm:$0xff]
    %v403 = vld [vmem:[#allocation5 + $0x100] sm:$0xff]
    %v404 = vld [vmem:[#allocation5 + $0x108] sm:$0xff]
    %v405 = vld [vmem:[#allocation5 + $0x110] sm:$0xff]
    %v406 = vld [vmem:[#allocation5 + $0x118] sm:$0xff]
    %v407 = vld [vmem:[#allocation5 + $0x120] sm:$0xff]
    %v408 = vld [vmem:[#allocation5 + $0x128] sm:$0xff]
    %v409 = vld [vmem:[#allocation5 + $0x130] sm:$0xff]
    %v410 = vld [vmem:[#allocation5 + $0x138] sm:$0xff]
    %v411 = vld [vmem:[#allocation5 + $0x140] sm:$0xff]
    %v412 = vld [vmem:[#allocation5 + $0x148] sm:$0xff]
    %v413 = vld [vmem:[#allocation5 + $0x150] sm:$0xff]
    %v414 = vld [vmem:[#allocation5 + $0x158] sm:$0xff]
    %v415 = vld [vmem:[#allocation5 + $0x160] sm:$0xff]
    %v416 = vld [vmem:[#allocation5 + $0x168] sm:$0xff]
    %v417 = vld [vmem:[#allocation5 + $0x170] sm:$0xff]
    %v418 = vld [vmem:[#allocation5 + $0x178] sm:$0xff]
    %v419 = vld [vmem:[#allocation5 + $0x180] sm:$0xff]
    %v420 = vld [vmem:[#allocation5 + $0x188] sm:$0xff]
    %v421 = vld [vmem:[#allocation5 + $0x190] sm:$0xff]
    %v422 = vld [vmem:[#allocation5 + $0x198] sm:$0xff]
    %v423 = vld [vmem:[#allocation5 + $0x1a0] sm:$0xff]
    %v424 = vld [vmem:[#allocation5 + $0x1a8] sm:$0xff]
    %v425 = vld [vmem:[#allocation5 + $0x1b0] sm:$0xff]
    %v426 = vld [vmem:[#allocation5 + $0x1b8] sm:$0xff]
    %v427 = vld [vmem:[#allocation5 + $0x1c0] sm:$0xff]
    %v428 = vld [vmem:[#allocation5 + $0x1c8] sm:$0xff]
    %v429 = vld [vmem:[#allocation5 + $0x1d0] sm:$0xff]
    %v430 = vld [vmem:[#allocation5 + $0x1d8] sm:$0xff]
    %v431 = vld [vmem:[#allocation5 + $0x1e0] sm:$0xff]
    %v432 = vld [vmem:[#allocation5 + $0x1e8] sm:$0xff]
    %v433 = vld [vmem:[#allocation5 + $0x1f0] sm:$0xff]
    %v434 = vld [vmem:[#allocation5 + $0x1f8] sm:$0xff]
    %v435 = vld [vmem:[#allocation3] sm:$0xff]
    %s436 = smul.u32 0, 4
    %s437 = smul.addr %s436, 8
    %s438 = scalar_lea.vmem [#allocation2], %s437
    %v439 = vld [vmem:[%s438] sm:$0xff]
    %v440 = vld [vmem:[%s438 + $0x8] sm:$0xff]
    %v441 = vld [vmem:[%s438 + $0x10] sm:$0xff]
    %v442 = vld [vmem:[%s438 + $0x18] sm:$0xff]
    %443 = vmatprep.subr.mxu0 %v432
    %444 = vmatpush1.msra.mxu0 %v431
    %445 = vmatprep.subr.mxu0 %v428
    %446 = vmatpush1.msra.mxu0 %v427
    %447 = vmatprep.subr.mxu0 %v424
    %448 = vmatpush1.msra.mxu0 %v423
    %449 = vmatprep.subr.mxu0 %v420
    %450 = vmatpush1.msra.mxu0 %v419
    %451 = vmatprep.subr.mxu0 %v416
    %452 = vmatpush1.msra.mxu0 %v415
    %453 = vmatprep.subr.mxu0 %v412
    %454 = vmatpush1.msra.mxu0 %v411
    %455 = vmatprep.subr.mxu0 %v408
    %456 = vmatpush1.msra.mxu0 %v407
    %457 = vmatprep.subr.mxu0 %v404
    %458 = vmatpush1.msra.mxu0 %v403
    %459 = vmatprep.subr.mxu0 %v400
    %460 = vmatpush1.msra.mxu0 %v399
    %461 = vmatprep.subr.mxu0 %v396
    %462 = vmatpush1.msra.mxu0 %v395
    %463 = vmatprep.subr.mxu0 %v392
    %464 = vmatpush1.msra.mxu0 %v391
    %465 = vmatprep.subr.mxu0 %v388
    %466 = vmatpush1.msra.mxu0 %v387
    %467 = vmatprep.subr.mxu0 %v384
    %468 = vmatpush1.msra.mxu0 %v383
    %469 = vmatprep.subr.mxu0 %v380
    %470 = vmatpush1.msra.mxu0 %v379
    %471 = vmatprep.subr.mxu0 %v376
    %472 = vmatpush1.msra.mxu0 %v375
    %473 = vmatprep.subr.mxu0 %v372
    %474 = vmatpush1.msra.mxu0 %v371
    %475 = vmatprep.subr.mxu0 0.0
    %476 = vmatpush2.msra.mxu0 0.0
    %477 = vmatprep.subr.mxu0 0.0
    %478 = vmatpush2.msra.mxu0 0.0
    %479 = vmatprep.subr.mxu0 0.0
    %480 = vmatpush2.msra.mxu0 0.0
    %481 = vmatprep.subr.mxu0 0.0
    %482 = vmatpush2.msra.mxu0 0.0
    %483 = vmatprep.subr.mxu0 0.0
    %484 = vmatpush2.msra.mxu0 0.0
    %485 = vmatprep.subr.mxu0 0.0
    %486 = vmatpush2.msra.mxu0 0.0
    %487 = vmatprep.subr.mxu0 0.0
    %488 = vmatpush2.msra.mxu0 0.0
    %489 = vmatprep.subr.mxu0 0.0
    %490 = vmatpush2.msra.mxu0 0.0
    %491 = vmatprep.subr.mxu0 0.0
    %492 = vmatpush2.msra.mxu0 0.0
    %493 = vmatprep.subr.mxu0 0.0
    %494 = vmatpush2.msra.mxu0 0.0
    %495 = vmatprep.subr.mxu0 0.0
    %496 = vmatpush2.msra.mxu0 0.0
    %497 = vmatprep.subr.mxu0 0.0
    %498 = vmatpush2.msra.mxu0 0.0
    %499 = vmatprep.subr.mxu0 0.0
    %500 = vmatpush2.msra.mxu0 0.0
    %501 = vmatprep.subr.mxu0 0.0
    %502 = vmatpush2.msra.mxu0 0.0
    %503 = vmatprep.subr.mxu0 0.0
    %504 = vmatpush2.msra.mxu0 0.0
    %505 = vmatprep.subr.mxu0 0.0
    %506 = vmatpush2.msra.mxu0 0.0
    %507 = vmatprep.mubr.f32.mxu0 0.0
    %508 = vmatmul.mubr.f32.gmra.mxu0 %v435
    %v509 = vpop.f32.mrf.mxu0
    %v510 = vadd.f32 0.0, %v509
    %v511 = vpop.f32.mrf.mxu0
    %v512 = vadd.f32 0.0, %v511
    %513 = vdwg.mxu0
    %514 = vmatprep.subr.mxu0 %v434
    %515 = vmatpush1.msra.mxu0 %v433
    %516 = vmatprep.subr.mxu0 %v430
    %517 = vmatpush1.msra.mxu0 %v429
    %518 = vmatprep.subr.mxu0 %v426
    %519 = vmatpush1.msra.mxu0 %v425
    %520 = vmatprep.subr.mxu0 %v422
    %521 = vmatpush1.msra.mxu0 %v421
    %522 = vmatprep.subr.mxu0 %v418
    %523 = vmatpush1.msra.mxu0 %v417
    %524 = vmatprep.subr.mxu0 %v414
    %525 = vmatpush1.msra.mxu0 %v413
    %526 = vmatprep.subr.mxu0 %v410
    %527 = vmatpush1.msra.mxu0 %v409
    %528 = vmatprep.subr.mxu0 %v406
    %529 = vmatpush1.msra.mxu0 %v405
    %530 = vmatprep.subr.mxu0 %v402
    %531 = vmatpush1.msra.mxu0 %v401
    %532 = vmatprep.subr.mxu0 %v398
    %533 = vmatpush1.msra.mxu0 %v397
    %534 = vmatprep.subr.mxu0 %v394
    %535 = vmatpush1.msra.mxu0 %v393
    %536 = vmatprep.subr.mxu0 %v390
    %537 = vmatpush1.msra.mxu0 %v389
    %538 = vmatprep.subr.mxu0 %v386
    %539 = vmatpush1.msra.mxu0 %v385
    %540 = vmatprep.subr.mxu0 %v382
    %541 = vmatpush1.msra.mxu0 %v381
    %542 = vmatprep.subr.mxu0 %v378
    %543 = vmatpush1.msra.mxu0 %v377
    %544 = vmatprep.subr.mxu0 %v374
    %545 = vmatpush1.msra.mxu0 %v373
    %546 = vmatprep.subr.mxu0 0.0
    %547 = vmatpush2.msra.mxu0 0.0
    %548 = vmatprep.subr.mxu0 0.0
    %549 = vmatpush2.msra.mxu0 0.0
    %550 = vmatprep.subr.mxu0 0.0
    %551 = vmatpush2.msra.mxu0 0.0
    %552 = vmatprep.subr.mxu0 0.0
    %553 = vmatpush2.msra.mxu0 0.0
    %554 = vmatprep.subr.mxu0 0.0
    %555 = vmatpush2.msra.mxu0 0.0
    %556 = vmatprep.subr.mxu0 0.0
    %557 = vmatpush2.msra.mxu0 0.0
    %558 = vmatprep.subr.mxu0 0.0
    %559 = vmatpush2.msra.mxu0 0.0
    %560 = vmatprep.subr.mxu0 0.0
    %561 = vmatpush2.msra.mxu0 0.0
    %562 = vmatprep.subr.mxu0 0.0
    %563 = vmatpush2.msra.mxu0 0.0
    %564 = vmatprep.subr.mxu0 0.0
    %565 = vmatpush2.msra.mxu0 0.0
    %566 = vmatprep.subr.mxu0 0.0
    %567 = vmatpush2.msra.mxu0 0.0
    %568 = vmatprep.subr.mxu0 0.0
    %569 = vmatpush2.msra.mxu0 0.0
    %570 = vmatprep.subr.mxu0 0.0
    %571 = vmatpush2.msra.mxu0 0.0
    %572 = vmatprep.subr.mxu0 0.0
    %573 = vmatpush2.msra.mxu0 0.0
    %574 = vmatprep.subr.mxu0 0.0
    %575 = vmatpush2.msra.mxu0 0.0
    %576 = vmatprep.subr.mxu0 0.0
    %577 = vmatpush2.msra.mxu0 0.0
    %578 = vmatprep.mubr.f32.mxu0 0.0
    %579 = vmatmul.mubr.f32.gmra.mxu0 %v435
    %v580 = vpop.f32.mrf.mxu0
    %v581 = vadd.f32 0.0, %v580
    %v582 = vpop.f32.mrf.mxu0
    %v583 = vadd.f32 0.0, %v582
    %584 = vdwg.mxu0
    %v585 = vadd.f32 %v439, %v510
    %v586 = vadd.f32 %v440, %v512
    %v587 = vadd.f32 %v441, %v581
    %v588 = vadd.f32 %v442, %v583
    %v589 = vxor.u32 %v585, 2147483648
    %v590 = vmul.f32 %v589, 1.442695
    %v591 = vpow.pop %v590
    %v592 = vadd.f32 %v591, 1.0
    %v593 = vrcp.pop %v592
    %v594 = vmul.f32 1.0, %v593
    %v595 = vxor.u32 %v586, 2147483648
    %v596 = vmul.f32 %v595, 1.442695
    %v597 = vpow.pop %v596
    %v598 = vadd.f32 %v597, 1.0
    %v599 = vrcp.pop %v598
    %v600 = vmul.f32 1.0, %v599
    %v601 = vtanh.pop %v587
    %v602 = vxor.u32 %v588, 2147483648
    %v603 = vmul.f32 %v602, 1.442695
    %v604 = vpow.pop %v603
    %v605 = vadd.f32 %v604, 1.0
    %v606 = vrcp.pop %v605
    %v607 = vmul.f32 1.0, %v606
    %v608 = vld [vmem:[#allocation4] sm:$0xff]
    %v609 = vmul.f32 %v600, %v608
    %v610 = vmul.f32 %v594, %v601
    %v611 = vadd.f32 %v609, %v610
    %v612 = vtanh.pop %v611
    %v613 = vmul.f32 %v607, %v612
    %614 = vst [vmem:[#allocation3] sm:$0xff] %v613
    %615 = vst [vmem:[#allocation4] sm:$0xff] %v611
    %616 = vst [vmem:[#allocation8] sm:$0xff] %v613
    %v617 = vld [vmem:[#allocation3] sm:$0xff]
    %s618 = smul.u32 1, 4
    %s619 = smul.addr %s618, 8
    %s620 = scalar_lea.vmem [#allocation2], %s619
    %v621 = vld [vmem:[%s620] sm:$0xff]
    %v622 = vld [vmem:[%s620 + $0x8] sm:$0xff]
    %v623 = vld [vmem:[%s620 + $0x10] sm:$0xff]
    %v624 = vld [vmem:[%s620 + $0x18] sm:$0xff]
    %625 = vmatprep.subr.mxu0 %v432
    %626 = vmatpush1.msra.mxu0 %v431
    %627 = vmatprep.subr.mxu0 %v428
    %628 = vmatpush1.msra.mxu0 %v427
    %629 = vmatprep.subr.mxu0 %v424
    %630 = vmatpush1.msra.mxu0 %v423
    %631 = vmatprep.subr.mxu0 %v420
    %632 = vmatpush1.msra.mxu0 %v419
    %633 = vmatprep.subr.mxu0 %v416
    %634 = vmatpush1.msra.mxu0 %v415
    %635 = vmatprep.subr.mxu0 %v412
    %636 = vmatpush1.msra.mxu0 %v411
    %637 = vmatprep.subr.mxu0 %v408
    %638 = vmatpush1.msra.mxu0 %v407
    %639 = vmatprep.subr.mxu0 %v404
    %640 = vmatpush1.msra.mxu0 %v403
    %641 = vmatprep.subr.mxu0 %v400
    %642 = vmatpush1.msra.mxu0 %v399
    %643 = vmatprep.subr.mxu0 %v396
    %644 = vmatpush1.msra.mxu0 %v395
    %645 = vmatprep.subr.mxu0 %v392
    %646 = vmatpush1.msra.mxu0 %v391
    %647 = vmatprep.subr.mxu0 %v388
    %648 = vmatpush1.msra.mxu0 %v387
    %649 = vmatprep.subr.mxu0 %v384
    %650 = vmatpush1.msra.mxu0 %v383
    %651 = vmatprep.subr.mxu0 %v380
    %652 = vmatpush1.msra.mxu0 %v379
    %653 = vmatprep.subr.mxu0 %v376
    %654 = vmatpush1.msra.mxu0 %v375
    %655 = vmatprep.subr.mxu0 %v372
    %656 = vmatpush1.msra.mxu0 %v371
    %657 = vmatprep.subr.mxu0 0.0
    %658 = vmatpush2.msra.mxu0 0.0
    %659 = vmatprep.subr.mxu0 0.0
    %660 = vmatpush2.msra.mxu0 0.0
    %661 = vmatprep.subr.mxu0 0.0
    %662 = vmatpush2.msra.mxu0 0.0
    %663 = vmatprep.subr.mxu0 0.0
    %664 = vmatpush2.msra.mxu0 0.0
    %665 = vmatprep.subr.mxu0 0.0
    %666 = vmatpush2.msra.mxu0 0.0
    %667 = vmatprep.subr.mxu0 0.0
    %668 = vmatpush2.msra.mxu0 0.0
    %669 = vmatprep.subr.mxu0 0.0
    %670 = vmatpush2.msra.mxu0 0.0
    %671 = vmatprep.subr.mxu0 0.0
    %672 = vmatpush2.msra.mxu0 0.0
    %673 = vmatprep.subr.mxu0 0.0
    %674 = vmatpush2.msra.mxu0 0.0
    %675 = vmatprep.subr.mxu0 0.0
    %676 = vmatpush2.msra.mxu0 0.0
    %677 = vmatprep.subr.mxu0 0.0
    %678 = vmatpush2.msra.mxu0 0.0
    %679 = vmatprep.subr.mxu0 0.0
    %680 = vmatpush2.msra.mxu0 0.0
    %681 = vmatprep.subr.mxu0 0.0
    %682 = vmatpush2.msra.mxu0 0.0
    %683 = vmatprep.subr.mxu0 0.0
    %684 = vmatpush2.msra.mxu0 0.0
    %685 = vmatprep.subr.mxu0 0.0
    %686 = vmatpush2.msra.mxu0 0.0
    %687 = vmatprep.subr.mxu0 0.0
    %688 = vmatpush2.msra.mxu0 0.0
    %689 = vmatprep.mubr.f32.mxu0 0.0
    %690 = vmatmul.mubr.f32.gmra.mxu0 %v617
    %v691 = vpop.f32.mrf.mxu0
    %v692 = vadd.f32 0.0, %v691
    %v693 = vpop.f32.mrf.mxu0
    %v694 = vadd.f32 0.0, %v693
    %695 = vdwg.mxu0
    %696 = vmatprep.subr.mxu0 %v434
    %697 = vmatpush1.msra.mxu0 %v433
    %698 = vmatprep.subr.mxu0 %v430
    %699 = vmatpush1.msra.mxu0 %v429
    %700 = vmatprep.subr.mxu0 %v426
    %701 = vmatpush1.msra.mxu0 %v425
    %702 = vmatprep.subr.mxu0 %v422
    %703 = vmatpush1.msra.mxu0 %v421
    %704 = vmatprep.subr.mxu0 %v418
    %705 = vmatpush1.msra.mxu0 %v417
    %706 = vmatprep.subr.mxu0 %v414
    %707 = vmatpush1.msra.mxu0 %v413
    %708 = vmatprep.subr.mxu0 %v410
    %709 = vmatpush1.msra.mxu0 %v409
    %710 = vmatprep.subr.mxu0 %v406
    %711 = vmatpush1.msra.mxu0 %v405
    %712 = vmatprep.subr.mxu0 %v402
    %713 = vmatpush1.msra.mxu0 %v401
    %714 = vmatprep.subr.mxu0 %v398
    %715 = vmatpush1.msra.mxu0 %v397
    %716 = vmatprep.subr.mxu0 %v394
    %717 = vmatpush1.msra.mxu0 %v393
    %718 = vmatprep.subr.mxu0 %v390
    %719 = vmatpush1.msra.mxu0 %v389
    %720 = vmatprep.subr.mxu0 %v386
    %721 = vmatpush1.msra.mxu0 %v385
    %722 = vmatprep.subr.mxu0 %v382
    %723 = vmatpush1.msra.mxu0 %v381
    %724 = vmatprep.subr.mxu0 %v378
    %725 = vmatpush1.msra.mxu0 %v377
    %726 = vmatprep.subr.mxu0 %v374
    %727 = vmatpush1.msra.mxu0 %v373
    %728 = vmatprep.subr.mxu0 0.0
    %729 = vmatpush2.msra.mxu0 0.0
    %730 = vmatprep.subr.mxu0 0.0
    %731 = vmatpush2.msra.mxu0 0.0
    %732 = vmatprep.subr.mxu0 0.0
    %733 = vmatpush2.msra.mxu0 0.0
    %734 = vmatprep.subr.mxu0 0.0
    %735 = vmatpush2.msra.mxu0 0.0
    %736 = vmatprep.subr.mxu0 0.0
    %737 = vmatpush2.msra.mxu0 0.0
    %738 = vmatprep.subr.mxu0 0.0
    %739 = vmatpush2.msra.mxu0 0.0
    %740 = vmatprep.subr.mxu0 0.0
    %741 = vmatpush2.msra.mxu0 0.0
    %742 = vmatprep.subr.mxu0 0.0
    %743 = vmatpush2.msra.mxu0 0.0
    %744 = vmatprep.subr.mxu0 0.0
    %745 = vmatpush2.msra.mxu0 0.0
    %746 = vmatprep.subr.mxu0 0.0
    %747 = vmatpush2.msra.mxu0 0.0
    %748 = vmatprep.subr.mxu0 0.0
    %749 = vmatpush2.msra.mxu0 0.0
    %750 = vmatprep.subr.mxu0 0.0
    %751 = vmatpush2.msra.mxu0 0.0
    %752 = vmatprep.subr.mxu0 0.0
    %753 = vmatpush2.msra.mxu0 0.0
    %754 = vmatprep.subr.mxu0 0.0
    %755 = vmatpush2.msra.mxu0 0.0
    %756 = vmatprep.subr.mxu0 0.0
    %757 = vmatpush2.msra.mxu0 0.0
    %758 = vmatprep.subr.mxu0 0.0
    %759 = vmatpush2.msra.mxu0 0.0
    %760 = vmatprep.mubr.f32.mxu0 0.0
    %761 = vmatmul.mubr.f32.gmra.mxu0 %v617
    %v762 = vpop.f32.mrf.mxu0
    %v763 = vadd.f32 0.0, %v762
    %v764 = vpop.f32.mrf.mxu0
    %v765 = vadd.f32 0.0, %v764
    %766 = vdwg.mxu0
    %v767 = vadd.f32 %v621, %v692
    %v768 = vadd.f32 %v622, %v694
    %v769 = vadd.f32 %v623, %v763
    %v770 = vadd.f32 %v624, %v765
    %v771 = vxor.u32 %v767, 2147483648
    %v772 = vmul.f32 %v771, 1.442695
    %v773 = vpow.pop %v772
    %v774 = vadd.f32 %v773, 1.0
    %v775 = vrcp.pop %v774
    %v776 = vmul.f32 1.0, %v775
    %v777 = vxor.u32 %v768, 2147483648
    %v778 = vmul.f32 %v777, 1.442695
    %v779 = vpow.pop %v778
    %v780 = vadd.f32 %v779, 1.0
    %v781 = vrcp.pop %v780
    %v782 = vmul.f32 1.0, %v781
    %v783 = vtanh.pop %v769
    %v784 = vxor.u32 %v770, 2147483648
    %v785 = vmul.f32 %v784, 1.442695
    %v786 = vpow.pop %v785
    %v787 = vadd.f32 %v786, 1.0
    %v788 = vrcp.pop %v787
    %v789 = vmul.f32 1.0, %v788
    %v790 = vld [vmem:[#allocation4] sm:$0xff]
    %v791 = vmul.f32 %v782, %v790
    %v792 = vmul.f32 %v776, %v783
    %v793 = vadd.f32 %v791, %v792
    %v794 = vtanh.pop %v793
    %v795 = vmul.f32 %v789, %v794
    %796 = vst [vmem:[#allocation3] sm:$0xff] %v795
    %797 = vst [vmem:[#allocation4] sm:$0xff] %v793
    %s798 = scalar_lea.vmem [#allocation8], 8
    %799 = vst [vmem:[%s798] sm:$0xff] %v795
    %v800 = vld [vmem:[#allocation3] sm:$0xff]
    %s801 = smul.u32 2, 4
    %s802 = smul.addr %s801, 8
    %s803 = scalar_lea.vmem [#allocation2], %s802
    %v804 = vld [vmem:[%s803] sm:$0xff]
    %v805 = vld [vmem:[%s803 + $0x8] sm:$0xff]
    %v806 = vld [vmem:[%s803 + $0x10] sm:$0xff]
    %v807 = vld [vmem:[%s803 + $0x18] sm:$0xff]
    %808 = vmatprep.subr.mxu0 %v432
    %809 = vmatpush1.msra.mxu0 %v431
    %810 = vmatprep.subr.mxu0 %v428
    %811 = vmatpush1.msra.mxu0 %v427
    %812 = vmatprep.subr.mxu0 %v424
    %813 = vmatpush1.msra.mxu0 %v423
    %814 = vmatprep.subr.mxu0 %v420
    %815 = vmatpush1.msra.mxu0 %v419
    %816 = vmatprep.subr.mxu0 %v416
    %817 = vmatpush1.msra.mxu0 %v415
    %818 = vmatprep.subr.mxu0 %v412
    %819 = vmatpush1.msra.mxu0 %v411
    %820 = vmatprep.subr.mxu0 %v408
    %821 = vmatpush1.msra.mxu0 %v407
    %822 = vmatprep.subr.mxu0 %v404
    %823 = vmatpush1.msra.mxu0 %v403
    %824 = vmatprep.subr.mxu0 %v400
    %825 = vmatpush1.msra.mxu0 %v399
    %826 = vmatprep.subr.mxu0 %v396
    %827 = vmatpush1.msra.mxu0 %v395
    %828 = vmatprep.subr.mxu0 %v392
    %829 = vmatpush1.msra.mxu0 %v391
    %830 = vmatprep.subr.mxu0 %v388
    %831 = vmatpush1.msra.mxu0 %v387
    %832 = vmatprep.subr.mxu0 %v384
    %833 = vmatpush1.msra.mxu0 %v383
    %834 = vmatprep.subr.mxu0 %v380
    %835 = vmatpush1.msra.mxu0 %v379
    %836 = vmatprep.subr.mxu0 %v376
    %837 = vmatpush1.msra.mxu0 %v375
    %838 = vmatprep.subr.mxu0 %v372
    %839 = vmatpush1.msra.mxu0 %v371
    %840 = vmatprep.subr.mxu0 0.0
    %841 = vmatpush2.msra.mxu0 0.0
    %842 = vmatprep.subr.mxu0 0.0
    %843 = vmatpush2.msra.mxu0 0.0
    %844 = vmatprep.subr.mxu0 0.0
    %845 = vmatpush2.msra.mxu0 0.0
    %846 = vmatprep.subr.mxu0 0.0
    %847 = vmatpush2.msra.mxu0 0.0
    %848 = vmatprep.subr.mxu0 0.0
    %849 = vmatpush2.msra.mxu0 0.0
    %850 = vmatprep.subr.mxu0 0.0
    %851 = vmatpush2.msra.mxu0 0.0
    %852 = vmatprep.subr.mxu0 0.0
    %853 = vmatpush2.msra.mxu0 0.0
    %854 = vmatprep.subr.mxu0 0.0
    %855 = vmatpush2.msra.mxu0 0.0
    %856 = vmatprep.subr.mxu0 0.0
    %857 = vmatpush2.msra.mxu0 0.0
    %858 = vmatprep.subr.mxu0 0.0
    %859 = vmatpush2.msra.mxu0 0.0
    %860 = vmatprep.subr.mxu0 0.0
    %861 = vmatpush2.msra.mxu0 0.0
    %862 = vmatprep.subr.mxu0 0.0
    %863 = vmatpush2.msra.mxu0 0.0
    %864 = vmatprep.subr.mxu0 0.0
    %865 = vmatpush2.msra.mxu0 0.0
    %866 = vmatprep.subr.mxu0 0.0
    %867 = vmatpush2.msra.mxu0 0.0
    %868 = vmatprep.subr.mxu0 0.0
    %869 = vmatpush2.msra.mxu0 0.0
    %870 = vmatprep.subr.mxu0 0.0
    %871 = vmatpush2.msra.mxu0 0.0
    %872 = vmatprep.mubr.f32.mxu0 0.0
    %873 = vmatmul.mubr.f32.gmra.mxu0 %v800
    %v874 = vpop.f32.mrf.mxu0
    %v875 = vadd.f32 0.0, %v874
    %v876 = vpop.f32.mrf.mxu0
    %v877 = vadd.f32 0.0, %v876
    %878 = vdwg.mxu0
    %879 = vmatprep.subr.mxu0 %v434
    %880 = vmatpush1.msra.mxu0 %v433
    %881 = vmatprep.subr.mxu0 %v430
    %882 = vmatpush1.msra.mxu0 %v429
    %883 = vmatprep.subr.mxu0 %v426
    %884 = vmatpush1.msra.mxu0 %v425
    %885 = vmatprep.subr.mxu0 %v422
    %886 = vmatpush1.msra.mxu0 %v421
    %887 = vmatprep.subr.mxu0 %v418
    %888 = vmatpush1.msra.mxu0 %v417
    %889 = vmatprep.subr.mxu0 %v414
    %890 = vmatpush1.msra.mxu0 %v413
    %891 = vmatprep.subr.mxu0 %v410
    %892 = vmatpush1.msra.mxu0 %v409
    %893 = vmatprep.subr.mxu0 %v406
    %894 = vmatpush1.msra.mxu0 %v405
    %895 = vmatprep.subr.mxu0 %v402
    %896 = vmatpush1.msra.mxu0 %v401
    %897 = vmatprep.subr.mxu0 %v398
    %898 = vmatpush1.msra.mxu0 %v397
    %899 = vmatprep.subr.mxu0 %v394
    %900 = vmatpush1.msra.mxu0 %v393
    %901 = vmatprep.subr.mxu0 %v390
    %902 = vmatpush1.msra.mxu0 %v389
    %903 = vmatprep.subr.mxu0 %v386
    %904 = vmatpush1.msra.mxu0 %v385
    %905 = vmatprep.subr.mxu0 %v382
    %906 = vmatpush1.msra.mxu0 %v381
    %907 = vmatprep.subr.mxu0 %v378
    %908 = vmatpush1.msra.mxu0 %v377
    %909 = vmatprep.subr.mxu0 %v374
    %910 = vmatpush1.msra.mxu0 %v373
    %911 = vmatprep.subr.mxu0 0.0
    %912 = vmatpush2.msra.mxu0 0.0
    %913 = vmatprep.subr.mxu0 0.0
    %914 = vmatpush2.msra.mxu0 0.0
    %915 = vmatprep.subr.mxu0 0.0
    %916 = vmatpush2.msra.mxu0 0.0
    %917 = vmatprep.subr.mxu0 0.0
    %918 = vmatpush2.msra.mxu0 0.0
    %919 = vmatprep.subr.mxu0 0.0
    %920 = vmatpush2.msra.mxu0 0.0
    %921 = vmatprep.subr.mxu0 0.0
    %922 = vmatpush2.msra.mxu0 0.0
    %923 = vmatprep.subr.mxu0 0.0
    %924 = vmatpush2.msra.mxu0 0.0
    %925 = vmatprep.subr.mxu0 0.0
    %926 = vmatpush2.msra.mxu0 0.0
    %927 = vmatprep.subr.mxu0 0.0
    %928 = vmatpush2.msra.mxu0 0.0
    %929 = vmatprep.subr.mxu0 0.0
    %930 = vmatpush2.msra.mxu0 0.0
    %931 = vmatprep.subr.mxu0 0.0
    %932 = vmatpush2.msra.mxu0 0.0
    %933 = vmatprep.subr.mxu0 0.0
    %934 = vmatpush2.msra.mxu0 0.0
    %935 = vmatprep.subr.mxu0 0.0
    %936 = vmatpush2.msra.mxu0 0.0
    %937 = vmatprep.subr.mxu0 0.0
    %938 = vmatpush2.msra.mxu0 0.0
    %939 = vmatprep.subr.mxu0 0.0
    %940 = vmatpush2.msra.mxu0 0.0
    %941 = vmatprep.subr.mxu0 0.0
    %942 = vmatpush2.msra.mxu0 0.0
    %943 = vmatprep.mubr.f32.mxu0 0.0
    %944 = vmatmul.mubr.f32.gmra.mxu0 %v800
    %v945 = vpop.f32.mrf.mxu0
    %v946 = vadd.f32 0.0, %v945
    %v947 = vpop.f32.mrf.mxu0
    %v948 = vadd.f32 0.0, %v947
    %949 = vdwg.mxu0
    %v950 = vadd.f32 %v804, %v875
    %v951 = vadd.f32 %v805, %v877
    %v952 = vadd.f32 %v806, %v946
    %v953 = vadd.f32 %v807, %v948
    %v954 = vxor.u32 %v950, 2147483648
    %v955 = vmul.f32 %v954, 1.442695
    %v956 = vpow.pop %v955
    %v957 = vadd.f32 %v956, 1.0
    %v958 = vrcp.pop %v957
    %v959 = vmul.f32 1.0, %v958
    %v960 = vxor.u32 %v951, 2147483648
    %v961 = vmul.f32 %v960, 1.442695
    %v962 = vpow.pop %v961
    %v963 = vadd.f32 %v962, 1.0
    %v964 = vrcp.pop %v963
    %v965 = vmul.f32 1.0, %v964
    %v966 = vtanh.pop %v952
    %v967 = vxor.u32 %v953, 2147483648
    %v968 = vmul.f32 %v967, 1.442695
    %v969 = vpow.pop %v968
    %v970 = vadd.f32 %v969, 1.0
    %v971 = vrcp.pop %v970
    %v972 = vmul.f32 1.0, %v971
    %v973 = vld [vmem:[#allocation4] sm:$0xff]
    %v974 = vmul.f32 %v965, %v973
    %v975 = vmul.f32 %v959, %v966
    %v976 = vadd.f32 %v974, %v975
    %v977 = vtanh.pop %v976
    %v978 = vmul.f32 %v972, %v977
    %979 = vst [vmem:[#allocation3] sm:$0xff] %v978
    %980 = vst [vmem:[#allocation4] sm:$0xff] %v976
    %s981 = scalar_lea.vmem [#allocation8], 16
    %982 = vst [vmem:[%s981] sm:$0xff] %v978
    %v983 = vld [vmem:[#allocation3] sm:$0xff]
    %s984 = smul.u32 3, 4
    %s985 = smul.addr %s984, 8
    %s986 = scalar_lea.vmem [#allocation2], %s985
    %v987 = vld [vmem:[%s986] sm:$0xff]
    %v988 = vld [vmem:[%s986 + $0x8] sm:$0xff]
    %v989 = vld [vmem:[%s986 + $0x10] sm:$0xff]
    %v990 = vld [vmem:[%s986 + $0x18] sm:$0xff]
    %991 = vmatprep.subr.mxu0 %v432
    %992 = vmatpush1.msra.mxu0 %v431
    %993 = vmatprep.subr.mxu0 %v428
    %994 = vmatpush1.msra.mxu0 %v427
    %995 = vmatprep.subr.mxu0 %v424
    %996 = vmatpush1.msra.mxu0 %v423
    %997 = vmatprep.subr.mxu0 %v420
    %998 = vmatpush1.msra.mxu0 %v419
    %999 = vmatprep.subr.mxu0 %v416
    %1000 = vmatpush1.msra.mxu0 %v415
    %1001 = vmatprep.subr.mxu0 %v412
    %1002 = vmatpush1.msra.mxu0 %v411
    %1003 = vmatprep.subr.mxu0 %v408
    %1004 = vmatpush1.msra.mxu0 %v407
    %1005 = vmatprep.subr.mxu0 %v404
    %1006 = vmatpush1.msra.mxu0 %v403
    %1007 = vmatprep.subr.mxu0 %v400
    %1008 = vmatpush1.msra.mxu0 %v399
    %1009 = vmatprep.subr.mxu0 %v396
    %1010 = vmatpush1.msra.mxu0 %v395
    %1011 = vmatprep.subr.mxu0 %v392
    %1012 = vmatpush1.msra.mxu0 %v391
    %1013 = vmatprep.subr.mxu0 %v388
    %1014 = vmatpush1.msra.mxu0 %v387
    %1015 = vmatprep.subr.mxu0 %v384
    %1016 = vmatpush1.msra.mxu0 %v383
    %1017 = vmatprep.subr.mxu0 %v380
    %1018 = vmatpush1.msra.mxu0 %v379
    %1019 = vmatprep.subr.mxu0 %v376
    %1020 = vmatpush1.msra.mxu0 %v375
    %1021 = vmatprep.subr.mxu0 %v372
    %1022 = vmatpush1.msra.mxu0 %v371
    %1023 = vmatprep.subr.mxu0 0.0
    %1024 = vmatpush2.msra.mxu0 0.0
    %1025 = vmatprep.subr.mxu0 0.0
    %1026 = vmatpush2.msra.mxu0 0.0
    %1027 = vmatprep.subr.mxu0 0.0
    %1028 = vmatpush2.msra.mxu0 0.0
    %1029 = vmatprep.subr.mxu0 0.0
    %1030 = vmatpush2.msra.mxu0 0.0
    %1031 = vmatprep.subr.mxu0 0.0
    %1032 = vmatpush2.msra.mxu0 0.0
    %1033 = vmatprep.subr.mxu0 0.0
    %1034 = vmatpush2.msra.mxu0 0.0
    %1035 = vmatprep.subr.mxu0 0.0
    %1036 = vmatpush2.msra.mxu0 0.0
    %1037 = vmatprep.subr.mxu0 0.0
    %1038 = vmatpush2.msra.mxu0 0.0
    %1039 = vmatprep.subr.mxu0 0.0
    %1040 = vmatpush2.msra.mxu0 0.0
    %1041 = vmatprep.subr.mxu0 0.0
    %1042 = vmatpush2.msra.mxu0 0.0
    %1043 = vmatprep.subr.mxu0 0.0
    %1044 = vmatpush2.msra.mxu0 0.0
    %1045 = vmatprep.subr.mxu0 0.0
    %1046 = vmatpush2.msra.mxu0 0.0
    %1047 = vmatprep.subr.mxu0 0.0
    %1048 = vmatpush2.msra.mxu0 0.0
    %1049 = vmatprep.subr.mxu0 0.0
    %1050 = vmatpush2.msra.mxu0 0.0
    %1051 = vmatprep.subr.mxu0 0.0
    %1052 = vmatpush2.msra.mxu0 0.0
    %1053 = vmatprep.subr.mxu0 0.0
    %1054 = vmatpush2.msra.mxu0 0.0
    %1055 = vmatprep.mubr.f32.mxu0 0.0
    %1056 = vmatmul.mubr.f32.gmra.mxu0 %v983
    %v1057 = vpop.f32.mrf.mxu0
    %v1058 = vadd.f32 0.0, %v1057
    %v1059 = vpop.f32.mrf.mxu0
    %v1060 = vadd.f32 0.0, %v1059
    %1061 = vdwg.mxu0
    %1062 = vmatprep.subr.mxu0 %v434
    %1063 = vmatpush1.msra.mxu0 %v433
    %1064 = vmatprep.subr.mxu0 %v430
    %1065 = vmatpush1.msra.mxu0 %v429
    %1066 = vmatprep.subr.mxu0 %v426
    %1067 = vmatpush1.msra.mxu0 %v425
    %1068 = vmatprep.subr.mxu0 %v422
    %1069 = vmatpush1.msra.mxu0 %v421
    %1070 = vmatprep.subr.mxu0 %v418
    %1071 = vmatpush1.msra.mxu0 %v417
    %1072 = vmatprep.subr.mxu0 %v414
    %1073 = vmatpush1.msra.mxu0 %v413
    %1074 = vmatprep.subr.mxu0 %v410
    %1075 = vmatpush1.msra.mxu0 %v409
    %1076 = vmatprep.subr.mxu0 %v406
    %1077 = vmatpush1.msra.mxu0 %v405
    %1078 = vmatprep.subr.mxu0 %v402
    %1079 = vmatpush1.msra.mxu0 %v401
    %1080 = vmatprep.subr.mxu0 %v398
    %1081 = vmatpush1.msra.mxu0 %v397
    %1082 = vmatprep.subr.mxu0 %v394
    %1083 = vmatpush1.msra.mxu0 %v393
    %1084 = vmatprep.subr.mxu0 %v390
    %1085 = vmatpush1.msra.mxu0 %v389
    %1086 = vmatprep.subr.mxu0 %v386
    %1087 = vmatpush1.msra.mxu0 %v385
    %1088 = vmatprep.subr.mxu0 %v382
    %1089 = vmatpush1.msra.mxu0 %v381
    %1090 = vmatprep.subr.mxu0 %v378
    %1091 = vmatpush1.msra.mxu0 %v377
    %1092 = vmatprep.subr.mxu0 %v374
    %1093 = vmatpush1.msra.mxu0 %v373
    %1094 = vmatprep.subr.mxu0 0.0
    %1095 = vmatpush2.msra.mxu0 0.0
    %1096 = vmatprep.subr.mxu0 0.0
    %1097 = vmatpush2.msra.mxu0 0.0
    %1098 = vmatprep.subr.mxu0 0.0
    %1099 = vmatpush2.msra.mxu0 0.0
    %1100 = vmatprep.subr.mxu0 0.0
    %1101 = vmatpush2.msra.mxu0 0.0
    %1102 = vmatprep.subr.mxu0 0.0
    %1103 = vmatpush2.msra.mxu0 0.0
    %1104 = vmatprep.subr.mxu0 0.0
    %1105 = vmatpush2.msra.mxu0 0.0
    %1106 = vmatprep.subr.mxu0 0.0
    %1107 = vmatpush2.msra.mxu0 0.0
    %1108 = vmatprep.subr.mxu0 0.0
    %1109 = vmatpush2.msra.mxu0 0.0
    %1110 = vmatprep.subr.mxu0 0.0
    %1111 = vmatpush2.msra.mxu0 0.0
    %1112 = vmatprep.subr.mxu0 0.0
    %1113 = vmatpush2.msra.mxu0 0.0
    %1114 = vmatprep.subr.mxu0 0.0
    %1115 = vmatpush2.msra.mxu0 0.0
    %1116 = vmatprep.subr.mxu0 0.0
    %1117 = vmatpush2.msra.mxu0 0.0
    %1118 = vmatprep.subr.mxu0 0.0
    %1119 = vmatpush2.msra.mxu0 0.0
    %1120 = vmatprep.subr.mxu0 0.0
    %1121 = vmatpush2.msra.mxu0 0.0
    %1122 = vmatprep.subr.mxu0 0.0
    %1123 = vmatpush2.msra.mxu0 0.0
    %1124 = vmatprep.subr.mxu0 0.0
    %1125 = vmatpush2.msra.mxu0 0.0
    %1126 = vmatprep.mubr.f32.mxu0 0.0
    %1127 = vmatmul.mubr.f32.gmra.mxu0 %v983
    %v1128 = vpop.f32.mrf.mxu0
    %v1129 = vadd.f32 0.0, %v1128
    %v1130 = vpop.f32.mrf.mxu0
    %v1131 = vadd.f32 0.0, %v1130
    %1132 = vdwg.mxu0
    %v1133 = vadd.f32 %v987, %v1058
    %v1134 = vadd.f32 %v988, %v1060
    %v1135 = vadd.f32 %v989, %v1129
    %v1136 = vadd.f32 %v990, %v1131
    %v1137 = vxor.u32 %v1133, 2147483648
    %v1138 = vmul.f32 %v1137, 1.442695
    %v1139 = vpow.pop %v1138
    %v1140 = vadd.f32 %v1139, 1.0
    %v1141 = vrcp.pop %v1140
    %v1142 = vmul.f32 1.0, %v1141
    %v1143 = vxor.u32 %v1134, 2147483648
    %v1144 = vmul.f32 %v1143, 1.442695
    %v1145 = vpow.pop %v1144
    %v1146 = vadd.f32 %v1145, 1.0
    %v1147 = vrcp.pop %v1146
    %v1148 = vmul.f32 1.0, %v1147
    %v1149 = vtanh.pop %v1135
    %v1150 = vxor.u32 %v1136, 2147483648
    %v1151 = vmul.f32 %v1150, 1.442695
    %v1152 = vpow.pop %v1151
    %v1153 = vadd.f32 %v1152, 1.0
    %v1154 = vrcp.pop %v1153
    %v1155 = vmul.f32 1.0, %v1154
    %v1156 = vld [vmem:[#allocation4] sm:$0xff]
    %v1157 = vmul.f32 %v1148, %v1156
    %v1158 = vmul.f32 %v1142, %v1149
    %v1159 = vadd.f32 %v1157, %v1158
    %v1160 = vtanh.pop %v1159
    %v1161 = vmul.f32 %v1155, %v1160
    %1162 = vst [vmem:[#allocation3] sm:$0xff] %v1161
    %1163 = vst [vmem:[#allocation4] sm:$0xff] %v1159
    %s1164 = scalar_lea.vmem [#allocation8], 24
    %1165 = vst [vmem:[%s1164] sm:$0xff] %v1161
    %v1166 = vld [vmem:[#allocation3] sm:$0xff]
    %s1167 = smul.u32 4, 4
    %s1168 = smul.addr %s1167, 8
    %s1169 = scalar_lea.vmem [#allocation2], %s1168
    %v1170 = vld [vmem:[%s1169] sm:$0xff]
    %v1171 = vld [vmem:[%s1169 + $0x8] sm:$0xff]
    %v1172 = vld [vmem:[%s1169 + $0x10] sm:$0xff]
    %v1173 = vld [vmem:[%s1169 + $0x18] sm:$0xff]
    %1174 = vmatprep.subr.mxu0 %v432
    %1175 = vmatpush1.msra.mxu0 %v431
    %1176 = vmatprep.subr.mxu0 %v428
    %1177 = vmatpush1.msra.mxu0 %v427
    %1178 = vmatprep.subr.mxu0 %v424
    %1179 = vmatpush1.msra.mxu0 %v423
    %1180 = vmatprep.subr.mxu0 %v420
    %1181 = vmatpush1.msra.mxu0 %v419
    %1182 = vmatprep.subr.mxu0 %v416
    %1183 = vmatpush1.msra.mxu0 %v415
    %1184 = vmatprep.subr.mxu0 %v412
    %1185 = vmatpush1.msra.mxu0 %v411
    %1186 = vmatprep.subr.mxu0 %v408
    %1187 = vmatpush1.msra.mxu0 %v407
    %1188 = vmatprep.subr.mxu0 %v404
    %1189 = vmatpush1.msra.mxu0 %v403
    %1190 = vmatprep.subr.mxu0 %v400
    %1191 = vmatpush1.msra.mxu0 %v399
    %1192 = vmatprep.subr.mxu0 %v396
    %1193 = vmatpush1.msra.mxu0 %v395
    %1194 = vmatprep.subr.mxu0 %v392
    %1195 = vmatpush1.msra.mxu0 %v391
    %1196 = vmatprep.subr.mxu0 %v388
    %1197 = vmatpush1.msra.mxu0 %v387
    %1198 = vmatprep.subr.mxu0 %v384
    %1199 = vmatpush1.msra.mxu0 %v383
    %1200 = vmatprep.subr.mxu0 %v380
    %1201 = vmatpush1.msra.mxu0 %v379
    %1202 = vmatprep.subr.mxu0 %v376
    %1203 = vmatpush1.msra.mxu0 %v375
    %1204 = vmatprep.subr.mxu0 %v372
    %1205 = vmatpush1.msra.mxu0 %v371
    %1206 = vmatprep.subr.mxu0 0.0
    %1207 = vmatpush2.msra.mxu0 0.0
    %1208 = vmatprep.subr.mxu0 0.0
    %1209 = vmatpush2.msra.mxu0 0.0
    %1210 = vmatprep.subr.mxu0 0.0
    %1211 = vmatpush2.msra.mxu0 0.0
    %1212 = vmatprep.subr.mxu0 0.0
    %1213 = vmatpush2.msra.mxu0 0.0
    %1214 = vmatprep.subr.mxu0 0.0
    %1215 = vmatpush2.msra.mxu0 0.0
    %1216 = vmatprep.subr.mxu0 0.0
    %1217 = vmatpush2.msra.mxu0 0.0
    %1218 = vmatprep.subr.mxu0 0.0
    %1219 = vmatpush2.msra.mxu0 0.0
    %1220 = vmatprep.subr.mxu0 0.0
    %1221 = vmatpush2.msra.mxu0 0.0
    %1222 = vmatprep.subr.mxu0 0.0
    %1223 = vmatpush2.msra.mxu0 0.0
    %1224 = vmatprep.subr.mxu0 0.0
    %1225 = vmatpush2.msra.mxu0 0.0
    %1226 = vmatprep.subr.mxu0 0.0
    %1227 = vmatpush2.msra.mxu0 0.0
    %1228 = vmatprep.subr.mxu0 0.0
    %1229 = vmatpush2.msra.mxu0 0.0
    %1230 = vmatprep.subr.mxu0 0.0
    %1231 = vmatpush2.msra.mxu0 0.0
    %1232 = vmatprep.subr.mxu0 0.0
    %1233 = vmatpush2.msra.mxu0 0.0
    %1234 = vmatprep.subr.mxu0 0.0
    %1235 = vmatpush2.msra.mxu0 0.0
    %1236 = vmatprep.subr.mxu0 0.0
    %1237 = vmatpush2.msra.mxu0 0.0
    %1238 = vmatprep.mubr.f32.mxu0 0.0
    %1239 = vmatmul.mubr.f32.gmra.mxu0 %v1166
    %v1240 = vpop.f32.mrf.mxu0
    %v1241 = vadd.f32 0.0, %v1240
    %v1242 = vpop.f32.mrf.mxu0
    %v1243 = vadd.f32 0.0, %v1242
    %1244 = vdwg.mxu0
    %1245 = vmatprep.subr.mxu0 %v434
    %1246 = vmatpush1.msra.mxu0 %v433
    %1247 = vmatprep.subr.mxu0 %v430
    %1248 = vmatpush1.msra.mxu0 %v429
    %1249 = vmatprep.subr.mxu0 %v426
    %1250 = vmatpush1.msra.mxu0 %v425
    %1251 = vmatprep.subr.mxu0 %v422
    %1252 = vmatpush1.msra.mxu0 %v421
    %1253 = vmatprep.subr.mxu0 %v418
    %1254 = vmatpush1.msra.mxu0 %v417
    %1255 = vmatprep.subr.mxu0 %v414
    %1256 = vmatpush1.msra.mxu0 %v413
    %1257 = vmatprep.subr.mxu0 %v410
    %1258 = vmatpush1.msra.mxu0 %v409
    %1259 = vmatprep.subr.mxu0 %v406
    %1260 = vmatpush1.msra.mxu0 %v405
    %1261 = vmatprep.subr.mxu0 %v402
    %1262 = vmatpush1.msra.mxu0 %v401
    %1263 = vmatprep.subr.mxu0 %v398
    %1264 = vmatpush1.msra.mxu0 %v397
    %1265 = vmatprep.subr.mxu0 %v394
    %1266 = vmatpush1.msra.mxu0 %v393
    %1267 = vmatprep.subr.mxu0 %v390
    %1268 = vmatpush1.msra.mxu0 %v389
    %1269 = vmatprep.subr.mxu0 %v386
    %1270 = vmatpush1.msra.mxu0 %v385
    %1271 = vmatprep.subr.mxu0 %v382
    %1272 = vmatpush1.msra.mxu0 %v381
    %1273 = vmatprep.subr.mxu0 %v378
    %1274 = vmatpush1.msra.mxu0 %v377
    %1275 = vmatprep.subr.mxu0 %v374
    %1276 = vmatpush1.msra.mxu0 %v373
    %1277 = vmatprep.subr.mxu0 0.0
    %1278 = vmatpush2.msra.mxu0 0.0
    %1279 = vmatprep.subr.mxu0 0.0
    %1280 = vmatpush2.msra.mxu0 0.0
    %1281 = vmatprep.subr.mxu0 0.0
    %1282 = vmatpush2.msra.mxu0 0.0
    %1283 = vmatprep.subr.mxu0 0.0
    %1284 = vmatpush2.msra.mxu0 0.0
    %1285 = vmatprep.subr.mxu0 0.0
    %1286 = vmatpush2.msra.mxu0 0.0
    %1287 = vmatprep.subr.mxu0 0.0
    %1288 = vmatpush2.msra.mxu0 0.0
    %1289 = vmatprep.subr.mxu0 0.0
    %1290 = vmatpush2.msra.mxu0 0.0
    %1291 = vmatprep.subr.mxu0 0.0
    %1292 = vmatpush2.msra.mxu0 0.0
    %1293 = vmatprep.subr.mxu0 0.0
    %1294 = vmatpush2.msra.mxu0 0.0
    %1295 = vmatprep.subr.mxu0 0.0
    %1296 = vmatpush2.msra.mxu0 0.0
    %1297 = vmatprep.subr.mxu0 0.0
    %1298 = vmatpush2.msra.mxu0 0.0
    %1299 = vmatprep.subr.mxu0 0.0
    %1300 = vmatpush2.msra.mxu0 0.0
    %1301 = vmatprep.subr.mxu0 0.0
    %1302 = vmatpush2.msra.mxu0 0.0
    %1303 = vmatprep.subr.mxu0 0.0
    %1304 = vmatpush2.msra.mxu0 0.0
    %1305 = vmatprep.subr.mxu0 0.0
    %1306 = vmatpush2.msra.mxu0 0.0
    %1307 = vmatprep.subr.mxu0 0.0
    %1308 = vmatpush2.msra.mxu0 0.0
    %1309 = vmatprep.mubr.f32.mxu0 0.0
    %1310 = vmatmul.mubr.f32.gmra.mxu0 %v1166
    %v1311 = vpop.f32.mrf.mxu0
    %v1312 = vadd.f32 0.0, %v1311
    %v1313 = vpop.f32.mrf.mxu0
    %v1314 = vadd.f32 0.0, %v1313
    %1315 = vdwg.mxu0
    %v1316 = vadd.f32 %v1170, %v1241
    %v1317 = vadd.f32 %v1171, %v1243
    %v1318 = vadd.f32 %v1172, %v1312
    %v1319 = vadd.f32 %v1173, %v1314
    %v1320 = vxor.u32 %v1316, 2147483648
    %v1321 = vmul.f32 %v1320, 1.442695
    %v1322 = vpow.pop %v1321
    %v1323 = vadd.f32 %v1322, 1.0
    %v1324 = vrcp.pop %v1323
    %v1325 = vmul.f32 1.0, %v1324
    %v1326 = vxor.u32 %v1317, 2147483648
    %v1327 = vmul.f32 %v1326, 1.442695
    %v1328 = vpow.pop %v1327
    %v1329 = vadd.f32 %v1328, 1.0
    %v1330 = vrcp.pop %v1329
    %v1331 = vmul.f32 1.0, %v1330
    %v1332 = vtanh.pop %v1318
    %v1333 = vxor.u32 %v1319, 2147483648
    %v1334 = vmul.f32 %v1333, 1.442695
    %v1335 = vpow.pop %v1334
    %v1336 = vadd.f32 %v1335, 1.0
    %v1337 = vrcp.pop %v1336
    %v1338 = vmul.f32 1.0, %v1337
    %v1339 = vld [vmem:[#allocation4] sm:$0xff]
    %v1340 = vmul.f32 %v1331, %v1339
    %v1341 = vmul.f32 %v1325, %v1332
    %v1342 = vadd.f32 %v1340, %v1341
    %v1343 = vtanh.pop %v1342
    %v1344 = vmul.f32 %v1338, %v1343
    %1345 = vst [vmem:[#allocation3] sm:$0xff] %v1344
    %1346 = vst [vmem:[#allocation4] sm:$0xff] %v1342
    %s1347 = scalar_lea.vmem [#allocation8], 32
    %1348 = vst [vmem:[%s1347] sm:$0xff] %v1344
    %v1349 = vld [vmem:[#allocation3] sm:$0xff]
    %s1350 = smul.u32 5, 4
    %s1351 = smul.addr %s1350, 8
    %s1352 = scalar_lea.vmem [#allocation2], %s1351
    %v1353 = vld [vmem:[%s1352] sm:$0xff]
    %v1354 = vld [vmem:[%s1352 + $0x8] sm:$0xff]
    %v1355 = vld [vmem:[%s1352 + $0x10] sm:$0xff]
    %v1356 = vld [vmem:[%s1352 + $0x18] sm:$0xff]
    %1357 = vmatprep.subr.mxu0 %v432
    %1358 = vmatpush1.msra.mxu0 %v431
    %1359 = vmatprep.subr.mxu0 %v428
    %1360 = vmatpush1.msra.mxu0 %v427
    %1361 = vmatprep.subr.mxu0 %v424
    %1362 = vmatpush1.msra.mxu0 %v423
    %1363 = vmatprep.subr.mxu0 %v420
    %1364 = vmatpush1.msra.mxu0 %v419
    %1365 = vmatprep.subr.mxu0 %v416
    %1366 = vmatpush1.msra.mxu0 %v415
    %1367 = vmatprep.subr.mxu0 %v412
    %1368 = vmatpush1.msra.mxu0 %v411
    %1369 = vmatprep.subr.mxu0 %v408
    %1370 = vmatpush1.msra.mxu0 %v407
    %1371 = vmatprep.subr.mxu0 %v404
    %1372 = vmatpush1.msra.mxu0 %v403
    %1373 = vmatprep.subr.mxu0 %v400
    %1374 = vmatpush1.msra.mxu0 %v399
    %1375 = vmatprep.subr.mxu0 %v396
    %1376 = vmatpush1.msra.mxu0 %v395
    %1377 = vmatprep.subr.mxu0 %v392
    %1378 = vmatpush1.msra.mxu0 %v391
    %1379 = vmatprep.subr.mxu0 %v388
    %1380 = vmatpush1.msra.mxu0 %v387
    %1381 = vmatprep.subr.mxu0 %v384
    %1382 = vmatpush1.msra.mxu0 %v383
    %1383 = vmatprep.subr.mxu0 %v380
    %1384 = vmatpush1.msra.mxu0 %v379
    %1385 = vmatprep.subr.mxu0 %v376
    %1386 = vmatpush1.msra.mxu0 %v375
    %1387 = vmatprep.subr.mxu0 %v372
    %1388 = vmatpush1.msra.mxu0 %v371
    %1389 = vmatprep.subr.mxu0 0.0
    %1390 = vmatpush2.msra.mxu0 0.0
    %1391 = vmatprep.subr.mxu0 0.0
    %1392 = vmatpush2.msra.mxu0 0.0
    %1393 = vmatprep.subr.mxu0 0.0
    %1394 = vmatpush2.msra.mxu0 0.0
    %1395 = vmatprep.subr.mxu0 0.0
    %1396 = vmatpush2.msra.mxu0 0.0
    %1397 = vmatprep.subr.mxu0 0.0
    %1398 = vmatpush2.msra.mxu0 0.0
    %1399 = vmatprep.subr.mxu0 0.0
    %1400 = vmatpush2.msra.mxu0 0.0
    %1401 = vmatprep.subr.mxu0 0.0
    %1402 = vmatpush2.msra.mxu0 0.0
    %1403 = vmatprep.subr.mxu0 0.0
    %1404 = vmatpush2.msra.mxu0 0.0
    %1405 = vmatprep.subr.mxu0 0.0
    %1406 = vmatpush2.msra.mxu0 0.0
    %1407 = vmatprep.subr.mxu0 0.0
    %1408 = vmatpush2.msra.mxu0 0.0
    %1409 = vmatprep.subr.mxu0 0.0
    %1410 = vmatpush2.msra.mxu0 0.0
    %1411 = vmatprep.subr.mxu0 0.0
    %1412 = vmatpush2.msra.mxu0 0.0
    %1413 = vmatprep.subr.mxu0 0.0
    %1414 = vmatpush2.msra.mxu0 0.0
    %1415 = vmatprep.subr.mxu0 0.0
    %1416 = vmatpush2.msra.mxu0 0.0
    %1417 = vmatprep.subr.mxu0 0.0
    %1418 = vmatpush2.msra.mxu0 0.0
    %1419 = vmatprep.subr.mxu0 0.0
    %1420 = vmatpush2.msra.mxu0 0.0
    %1421 = vmatprep.mubr.f32.mxu0 0.0
    %1422 = vmatmul.mubr.f32.gmra.mxu0 %v1349
    %v1423 = vpop.f32.mrf.mxu0
    %v1424 = vadd.f32 0.0, %v1423
    %v1425 = vpop.f32.mrf.mxu0
    %v1426 = vadd.f32 0.0, %v1425
    %1427 = vdwg.mxu0
    %1428 = vmatprep.subr.mxu0 %v434
    %1429 = vmatpush1.msra.mxu0 %v433
    %1430 = vmatprep.subr.mxu0 %v430
    %1431 = vmatpush1.msra.mxu0 %v429
    %1432 = vmatprep.subr.mxu0 %v426
    %1433 = vmatpush1.msra.mxu0 %v425
    %1434 = vmatprep.subr.mxu0 %v422
    %1435 = vmatpush1.msra.mxu0 %v421
    %1436 = vmatprep.subr.mxu0 %v418
    %1437 = vmatpush1.msra.mxu0 %v417
    %1438 = vmatprep.subr.mxu0 %v414
    %1439 = vmatpush1.msra.mxu0 %v413
    %1440 = vmatprep.subr.mxu0 %v410
    %1441 = vmatpush1.msra.mxu0 %v409
    %1442 = vmatprep.subr.mxu0 %v406
    %1443 = vmatpush1.msra.mxu0 %v405
    %1444 = vmatprep.subr.mxu0 %v402
    %1445 = vmatpush1.msra.mxu0 %v401
    %1446 = vmatprep.subr.mxu0 %v398
    %1447 = vmatpush1.msra.mxu0 %v397
    %1448 = vmatprep.subr.mxu0 %v394
    %1449 = vmatpush1.msra.mxu0 %v393
    %1450 = vmatprep.subr.mxu0 %v390
    %1451 = vmatpush1.msra.mxu0 %v389
    %1452 = vmatprep.subr.mxu0 %v386
    %1453 = vmatpush1.msra.mxu0 %v385
    %1454 = vmatprep.subr.mxu0 %v382
    %1455 = vmatpush1.msra.mxu0 %v381
    %1456 = vmatprep.subr.mxu0 %v378
    %1457 = vmatpush1.msra.mxu0 %v377
    %1458 = vmatprep.subr.mxu0 %v374
    %1459 = vmatpush1.msra.mxu0 %v373
    %1460 = vmatprep.subr.mxu0 0.0
    %1461 = vmatpush2.msra.mxu0 0.0
    %1462 = vmatprep.subr.mxu0 0.0
    %1463 = vmatpush2.msra.mxu0 0.0
    %1464 = vmatprep.subr.mxu0 0.0
    %1465 = vmatpush2.msra.mxu0 0.0
    %1466 = vmatprep.subr.mxu0 0.0
    %1467 = vmatpush2.msra.mxu0 0.0
    %1468 = vmatprep.subr.mxu0 0.0
    %1469 = vmatpush2.msra.mxu0 0.0
    %1470 = vmatprep.subr.mxu0 0.0
    %1471 = vmatpush2.msra.mxu0 0.0
    %1472 = vmatprep.subr.mxu0 0.0
    %1473 = vmatpush2.msra.mxu0 0.0
    %1474 = vmatprep.subr.mxu0 0.0
    %1475 = vmatpush2.msra.mxu0 0.0
    %1476 = vmatprep.subr.mxu0 0.0
    %1477 = vmatpush2.msra.mxu0 0.0
    %1478 = vmatprep.subr.mxu0 0.0
    %1479 = vmatpush2.msra.mxu0 0.0
    %1480 = vmatprep.subr.mxu0 0.0
    %1481 = vmatpush2.msra.mxu0 0.0
    %1482 = vmatprep.subr.mxu0 0.0
    %1483 = vmatpush2.msra.mxu0 0.0
    %1484 = vmatprep.subr.mxu0 0.0
    %1485 = vmatpush2.msra.mxu0 0.0
    %1486 = vmatprep.subr.mxu0 0.0
    %1487 = vmatpush2.msra.mxu0 0.0
    %1488 = vmatprep.subr.mxu0 0.0
    %1489 = vmatpush2.msra.mxu0 0.0
    %1490 = vmatprep.subr.mxu0 0.0
    %1491 = vmatpush2.msra.mxu0 0.0
    %1492 = vmatprep.mubr.f32.mxu0 0.0
    %1493 = vmatmul.mubr.f32.gmra.mxu0 %v1349
    %v1494 = vpop.f32.mrf.mxu0
    %v1495 = vadd.f32 0.0, %v1494
    %v1496 = vpop.f32.mrf.mxu0
    %v1497 = vadd.f32 0.0, %v1496
    %1498 = vdwg.mxu0
    %v1499 = vadd.f32 %v1353, %v1424
    %v1500 = vadd.f32 %v1354, %v1426
    %v1501 = vadd.f32 %v1355, %v1495
    %v1502 = vadd.f32 %v1356, %v1497
    %v1503 = vxor.u32 %v1499, 2147483648
    %v1504 = vmul.f32 %v1503, 1.442695
    %v1505 = vpow.pop %v1504
    %v1506 = vadd.f32 %v1505, 1.0
    %v1507 = vrcp.pop %v1506
    %v1508 = vmul.f32 1.0, %v1507
    %v1509 = vxor.u32 %v1500, 2147483648
    %v1510 = vmul.f32 %v1509, 1.442695
    %v1511 = vpow.pop %v1510
    %v1512 = vadd.f32 %v1511, 1.0
    %v1513 = vrcp.pop %v1512
    %v1514 = vmul.f32 1.0, %v1513
    %v1515 = vtanh.pop %v1501
    %v1516 = vxor.u32 %v1502, 2147483648
    %v1517 = vmul.f32 %v1516, 1.442695
    %v1518 = vpow.pop %v1517
    %v1519 = vadd.f32 %v1518, 1.0
    %v1520 = vrcp.pop %v1519
    %v1521 = vmul.f32 1.0, %v1520
    %v1522 = vld [vmem:[#allocation4] sm:$0xff]
    %v1523 = vmul.f32 %v1514, %v1522
    %v1524 = vmul.f32 %v1508, %v1515
    %v1525 = vadd.f32 %v1523, %v1524
    %v1526 = vtanh.pop %v1525
    %v1527 = vmul.f32 %v1521, %v1526
    %1528 = vst [vmem:[#allocation3] sm:$0xff] %v1527
    %1529 = vst [vmem:[#allocation4] sm:$0xff] %v1525
    %s1530 = scalar_lea.vmem [#allocation8], 40
    %1531 = vst [vmem:[%s1530] sm:$0xff] %v1527
    %v1532 = vld [vmem:[#allocation3] sm:$0xff]
    %s1533 = smul.u32 6, 4
    %s1534 = smul.addr %s1533, 8
    %s1535 = scalar_lea.vmem [#allocation2], %s1534
    %v1536 = vld [vmem:[%s1535] sm:$0xff]
    %v1537 = vld [vmem:[%s1535 + $0x8] sm:$0xff]
    %v1538 = vld [vmem:[%s1535 + $0x10] sm:$0xff]
    %v1539 = vld [vmem:[%s1535 + $0x18] sm:$0xff]
    %1540 = vmatprep.subr.mxu0 %v432
    %1541 = vmatpush1.msra.mxu0 %v431
    %1542 = vmatprep.subr.mxu0 %v428
    %1543 = vmatpush1.msra.mxu0 %v427
    %1544 = vmatprep.subr.mxu0 %v424
    %1545 = vmatpush1.msra.mxu0 %v423
    %1546 = vmatprep.subr.mxu0 %v420
    %1547 = vmatpush1.msra.mxu0 %v419
    %1548 = vmatprep.subr.mxu0 %v416
    %1549 = vmatpush1.msra.mxu0 %v415
    %1550 = vmatprep.subr.mxu0 %v412
    %1551 = vmatpush1.msra.mxu0 %v411
    %1552 = vmatprep.subr.mxu0 %v408
    %1553 = vmatpush1.msra.mxu0 %v407
    %1554 = vmatprep.subr.mxu0 %v404
    %1555 = vmatpush1.msra.mxu0 %v403
    %1556 = vmatprep.subr.mxu0 %v400
    %1557 = vmatpush1.msra.mxu0 %v399
    %1558 = vmatprep.subr.mxu0 %v396
    %1559 = vmatpush1.msra.mxu0 %v395
    %1560 = vmatprep.subr.mxu0 %v392
    %1561 = vmatpush1.msra.mxu0 %v391
    %1562 = vmatprep.subr.mxu0 %v388
    %1563 = vmatpush1.msra.mxu0 %v387
    %1564 = vmatprep.subr.mxu0 %v384
    %1565 = vmatpush1.msra.mxu0 %v383
    %1566 = vmatprep.subr.mxu0 %v380
    %1567 = vmatpush1.msra.mxu0 %v379
    %1568 = vmatprep.subr.mxu0 %v376
    %1569 = vmatpush1.msra.mxu0 %v375
    %1570 = vmatprep.subr.mxu0 %v372
    %1571 = vmatpush1.msra.mxu0 %v371
    %1572 = vmatprep.subr.mxu0 0.0
    %1573 = vmatpush2.msra.mxu0 0.0
    %1574 = vmatprep.subr.mxu0 0.0
    %1575 = vmatpush2.msra.mxu0 0.0
    %1576 = vmatprep.subr.mxu0 0.0
    %1577 = vmatpush2.msra.mxu0 0.0
    %1578 = vmatprep.subr.mxu0 0.0
    %1579 = vmatpush2.msra.mxu0 0.0
    %1580 = vmatprep.subr.mxu0 0.0
    %1581 = vmatpush2.msra.mxu0 0.0
    %1582 = vmatprep.subr.mxu0 0.0
    %1583 = vmatpush2.msra.mxu0 0.0
    %1584 = vmatprep.subr.mxu0 0.0
    %1585 = vmatpush2.msra.mxu0 0.0
    %1586 = vmatprep.subr.mxu0 0.0
    %1587 = vmatpush2.msra.mxu0 0.0
    %1588 = vmatprep.subr.mxu0 0.0
    %1589 = vmatpush2.msra.mxu0 0.0
    %1590 = vmatprep.subr.mxu0 0.0
    %1591 = vmatpush2.msra.mxu0 0.0
    %1592 = vmatprep.subr.mxu0 0.0
    %1593 = vmatpush2.msra.mxu0 0.0
    %1594 = vmatprep.subr.mxu0 0.0
    %1595 = vmatpush2.msra.mxu0 0.0
    %1596 = vmatprep.subr.mxu0 0.0
    %1597 = vmatpush2.msra.mxu0 0.0
    %1598 = vmatprep.subr.mxu0 0.0
    %1599 = vmatpush2.msra.mxu0 0.0
    %1600 = vmatprep.subr.mxu0 0.0
    %1601 = vmatpush2.msra.mxu0 0.0
    %1602 = vmatprep.subr.mxu0 0.0
    %1603 = vmatpush2.msra.mxu0 0.0
    %1604 = vmatprep.mubr.f32.mxu0 0.0
    %1605 = vmatmul.mubr.f32.gmra.mxu0 %v1532
    %v1606 = vpop.f32.mrf.mxu0
    %v1607 = vadd.f32 0.0, %v1606
    %v1608 = vpop.f32.mrf.mxu0
    %v1609 = vadd.f32 0.0, %v1608
    %1610 = vdwg.mxu0
    %1611 = vmatprep.subr.mxu0 %v434
    %1612 = vmatpush1.msra.mxu0 %v433
    %1613 = vmatprep.subr.mxu0 %v430
    %1614 = vmatpush1.msra.mxu0 %v429
    %1615 = vmatprep.subr.mxu0 %v426
    %1616 = vmatpush1.msra.mxu0 %v425
    %1617 = vmatprep.subr.mxu0 %v422
    %1618 = vmatpush1.msra.mxu0 %v421
    %1619 = vmatprep.subr.mxu0 %v418
    %1620 = vmatpush1.msra.mxu0 %v417
    %1621 = vmatprep.subr.mxu0 %v414
    %1622 = vmatpush1.msra.mxu0 %v413
    %1623 = vmatprep.subr.mxu0 %v410
    %1624 = vmatpush1.msra.mxu0 %v409
    %1625 = vmatprep.subr.mxu0 %v406
    %1626 = vmatpush1.msra.mxu0 %v405
    %1627 = vmatprep.subr.mxu0 %v402
    %1628 = vmatpush1.msra.mxu0 %v401
    %1629 = vmatprep.subr.mxu0 %v398
    %1630 = vmatpush1.msra.mxu0 %v397
    %1631 = vmatprep.subr.mxu0 %v394
    %1632 = vmatpush1.msra.mxu0 %v393
    %1633 = vmatprep.subr.mxu0 %v390
    %1634 = vmatpush1.msra.mxu0 %v389
    %1635 = vmatprep.subr.mxu0 %v386
    %1636 = vmatpush1.msra.mxu0 %v385
    %1637 = vmatprep.subr.mxu0 %v382
    %1638 = vmatpush1.msra.mxu0 %v381
    %1639 = vmatprep.subr.mxu0 %v378
    %1640 = vmatpush1.msra.mxu0 %v377
    %1641 = vmatprep.subr.mxu0 %v374
    %1642 = vmatpush1.msra.mxu0 %v373
    %1643 = vmatprep.subr.mxu0 0.0
    %1644 = vmatpush2.msra.mxu0 0.0
    %1645 = vmatprep.subr.mxu0 0.0
    %1646 = vmatpush2.msra.mxu0 0.0
    %1647 = vmatprep.subr.mxu0 0.0
    %1648 = vmatpush2.msra.mxu0 0.0
    %1649 = vmatprep.subr.mxu0 0.0
    %1650 = vmatpush2.msra.mxu0 0.0
    %1651 = vmatprep.subr.mxu0 0.0
    %1652 = vmatpush2.msra.mxu0 0.0
    %1653 = vmatprep.subr.mxu0 0.0
    %1654 = vmatpush2.msra.mxu0 0.0
    %1655 = vmatprep.subr.mxu0 0.0
    %1656 = vmatpush2.msra.mxu0 0.0
    %1657 = vmatprep.subr.mxu0 0.0
    %1658 = vmatpush2.msra.mxu0 0.0
    %1659 = vmatprep.subr.mxu0 0.0
    %1660 = vmatpush2.msra.mxu0 0.0
    %1661 = vmatprep.subr.mxu0 0.0
    %1662 = vmatpush2.msra.mxu0 0.0
    %1663 = vmatprep.subr.mxu0 0.0
    %1664 = vmatpush2.msra.mxu0 0.0
    %1665 = vmatprep.subr.mxu0 0.0
    %1666 = vmatpush2.msra.mxu0 0.0
    %1667 = vmatprep.subr.mxu0 0.0
    %1668 = vmatpush2.msra.mxu0 0.0
    %1669 = vmatprep.subr.mxu0 0.0
    %1670 = vmatpush2.msra.mxu0 0.0
    %1671 = vmatprep.subr.mxu0 0.0
    %1672 = vmatpush2.msra.mxu0 0.0
    %1673 = vmatprep.subr.mxu0 0.0
    %1674 = vmatpush2.msra.mxu0 0.0
    %1675 = vmatprep.mubr.f32.mxu0 0.0
    %1676 = vmatmul.mubr.f32.gmra.mxu0 %v1532
    %v1677 = vpop.f32.mrf.mxu0
    %v1678 = vadd.f32 0.0, %v1677
    %v1679 = vpop.f32.mrf.mxu0
    %v1680 = vadd.f32 0.0, %v1679
    %1681 = vdwg.mxu0
    %v1682 = vadd.f32 %v1536, %v1607
    %v1683 = vadd.f32 %v1537, %v1609
    %v1684 = vadd.f32 %v1538, %v1678
    %v1685 = vadd.f32 %v1539, %v1680
    %v1686 = vxor.u32 %v1682, 2147483648
    %v1687 = vmul.f32 %v1686, 1.442695
    %v1688 = vpow.pop %v1687
    %v1689 = vadd.f32 %v1688, 1.0
    %v1690 = vrcp.pop %v1689
    %v1691 = vmul.f32 1.0, %v1690
    %v1692 = vxor.u32 %v1683, 2147483648
    %v1693 = vmul.f32 %v1692, 1.442695
    %v1694 = vpow.pop %v1693
    %v1695 = vadd.f32 %v1694, 1.0
    %v1696 = vrcp.pop %v1695
    %v1697 = vmul.f32 1.0, %v1696
    %v1698 = vtanh.pop %v1684
    %v1699 = vxor.u32 %v1685, 2147483648
    %v1700 = vmul.f32 %v1699, 1.442695
    %v1701 = vpow.pop %v1700
    %v1702 = vadd.f32 %v1701, 1.0
    %v1703 = vrcp.pop %v1702
    %v1704 = vmul.f32 1.0, %v1703
    %v1705 = vld [vmem:[#allocation4] sm:$0xff]
    %v1706 = vmul.f32 %v1697, %v1705
    %v1707 = vmul.f32 %v1691, %v1698
    %v1708 = vadd.f32 %v1706, %v1707
    %v1709 = vtanh.pop %v1708
    %v1710 = vmul.f32 %v1704, %v1709
    %1711 = vst [vmem:[#allocation3] sm:$0xff] %v1710
    %1712 = vst [vmem:[#allocation4] sm:$0xff] %v1708
    %s1713 = scalar_lea.vmem [#allocation8], 48
    %1714 = vst [vmem:[%s1713] sm:$0xff] %v1710
    %v1715 = vld [vmem:[#allocation3] sm:$0xff]
    %s1716 = smul.u32 7, 4
    %s1717 = smul.addr %s1716, 8
    %s1718 = scalar_lea.vmem [#allocation2], %s1717
    %v1719 = vld [vmem:[%s1718] sm:$0xff]
    %v1720 = vld [vmem:[%s1718 + $0x8] sm:$0xff]
    %v1721 = vld [vmem:[%s1718 + $0x10] sm:$0xff]
    %v1722 = vld [vmem:[%s1718 + $0x18] sm:$0xff]
    %1723 = vmatprep.subr.mxu0 %v432
    %1724 = vmatpush1.msra.mxu0 %v431
    %1725 = vmatprep.subr.mxu0 %v428
    %1726 = vmatpush1.msra.mxu0 %v427
    %1727 = vmatprep.subr.mxu0 %v424
    %1728 = vmatpush1.msra.mxu0 %v423
    %1729 = vmatprep.subr.mxu0 %v420
    %1730 = vmatpush1.msra.mxu0 %v419
    %1731 = vmatprep.subr.mxu0 %v416
    %1732 = vmatpush1.msra.mxu0 %v415
    %1733 = vmatprep.subr.mxu0 %v412
    %1734 = vmatpush1.msra.mxu0 %v411
    %1735 = vmatprep.subr.mxu0 %v408
    %1736 = vmatpush1.msra.mxu0 %v407
    %1737 = vmatprep.subr.mxu0 %v404
    %1738 = vmatpush1.msra.mxu0 %v403
    %1739 = vmatprep.subr.mxu0 %v400
    %1740 = vmatpush1.msra.mxu0 %v399
    %1741 = vmatprep.subr.mxu0 %v396
    %1742 = vmatpush1.msra.mxu0 %v395
    %1743 = vmatprep.subr.mxu0 %v392
    %1744 = vmatpush1.msra.mxu0 %v391
    %1745 = vmatprep.subr.mxu0 %v388
    %1746 = vmatpush1.msra.mxu0 %v387
    %1747 = vmatprep.subr.mxu0 %v384
    %1748 = vmatpush1.msra.mxu0 %v383
    %1749 = vmatprep.subr.mxu0 %v380
    %1750 = vmatpush1.msra.mxu0 %v379
    %1751 = vmatprep.subr.mxu0 %v376
    %1752 = vmatpush1.msra.mxu0 %v375
    %1753 = vmatprep.subr.mxu0 %v372
    %1754 = vmatpush1.msra.mxu0 %v371
    %1755 = vmatprep.subr.mxu0 0.0
    %1756 = vmatpush2.msra.mxu0 0.0
    %1757 = vmatprep.subr.mxu0 0.0
    %1758 = vmatpush2.msra.mxu0 0.0
    %1759 = vmatprep.subr.mxu0 0.0
    %1760 = vmatpush2.msra.mxu0 0.0
    %1761 = vmatprep.subr.mxu0 0.0
    %1762 = vmatpush2.msra.mxu0 0.0
    %1763 = vmatprep.subr.mxu0 0.0
    %1764 = vmatpush2.msra.mxu0 0.0
    %1765 = vmatprep.subr.mxu0 0.0
    %1766 = vmatpush2.msra.mxu0 0.0
    %1767 = vmatprep.subr.mxu0 0.0
    %1768 = vmatpush2.msra.mxu0 0.0
    %1769 = vmatprep.subr.mxu0 0.0
    %1770 = vmatpush2.msra.mxu0 0.0
    %1771 = vmatprep.subr.mxu0 0.0
    %1772 = vmatpush2.msra.mxu0 0.0
    %1773 = vmatprep.subr.mxu0 0.0
    %1774 = vmatpush2.msra.mxu0 0.0
    %1775 = vmatprep.subr.mxu0 0.0
    %1776 = vmatpush2.msra.mxu0 0.0
    %1777 = vmatprep.subr.mxu0 0.0
    %1778 = vmatpush2.msra.mxu0 0.0
    %1779 = vmatprep.subr.mxu0 0.0
    %1780 = vmatpush2.msra.mxu0 0.0
    %1781 = vmatprep.subr.mxu0 0.0
    %1782 = vmatpush2.msra.mxu0 0.0
    %1783 = vmatprep.subr.mxu0 0.0
    %1784 = vmatpush2.msra.mxu0 0.0
    %1785 = vmatprep.subr.mxu0 0.0
    %1786 = vmatpush2.msra.mxu0 0.0
    %1787 = vmatprep.mubr.f32.mxu0 0.0
    %1788 = vmatmul.mubr.f32.gmra.mxu0 %v1715
    %v1789 = vpop.f32.mrf.mxu0
    %v1790 = vadd.f32 0.0, %v1789
    %v1791 = vpop.f32.mrf.mxu0
    %v1792 = vadd.f32 0.0, %v1791
    %1793 = vdwg.mxu0
    %1794 = vmatprep.subr.mxu0 %v434
    %1795 = vmatpush1.msra.mxu0 %v433
    %1796 = vmatprep.subr.mxu0 %v430
    %1797 = vmatpush1.msra.mxu0 %v429
    %1798 = vmatprep.subr.mxu0 %v426
    %1799 = vmatpush1.msra.mxu0 %v425
    %1800 = vmatprep.subr.mxu0 %v422
    %1801 = vmatpush1.msra.mxu0 %v421
    %1802 = vmatprep.subr.mxu0 %v418
    %1803 = vmatpush1.msra.mxu0 %v417
    %1804 = vmatprep.subr.mxu0 %v414
    %1805 = vmatpush1.msra.mxu0 %v413
    %1806 = vmatprep.subr.mxu0 %v410
    %1807 = vmatpush1.msra.mxu0 %v409
    %1808 = vmatprep.subr.mxu0 %v406
    %1809 = vmatpush1.msra.mxu0 %v405
    %1810 = vmatprep.subr.mxu0 %v402
    %1811 = vmatpush1.msra.mxu0 %v401
    %1812 = vmatprep.subr.mxu0 %v398
    %1813 = vmatpush1.msra.mxu0 %v397
    %1814 = vmatprep.subr.mxu0 %v394
    %1815 = vmatpush1.msra.mxu0 %v393
    %1816 = vmatprep.subr.mxu0 %v390
    %1817 = vmatpush1.msra.mxu0 %v389
    %1818 = vmatprep.subr.mxu0 %v386
    %1819 = vmatpush1.msra.mxu0 %v385
    %1820 = vmatprep.subr.mxu0 %v382
    %1821 = vmatpush1.msra.mxu0 %v381
    %1822 = vmatprep.subr.mxu0 %v378
    %1823 = vmatpush1.msra.mxu0 %v377
    %1824 = vmatprep.subr.mxu0 %v374
    %1825 = vmatpush1.msra.mxu0 %v373
    %1826 = vmatprep.subr.mxu0 0.0
    %1827 = vmatpush2.msra.mxu0 0.0
    %1828 = vmatprep.subr.mxu0 0.0
    %1829 = vmatpush2.msra.mxu0 0.0
    %1830 = vmatprep.subr.mxu0 0.0
    %1831 = vmatpush2.msra.mxu0 0.0
    %1832 = vmatprep.subr.mxu0 0.0
    %1833 = vmatpush2.msra.mxu0 0.0
    %1834 = vmatprep.subr.mxu0 0.0
    %1835 = vmatpush2.msra.mxu0 0.0
    %1836 = vmatprep.subr.mxu0 0.0
    %1837 = vmatpush2.msra.mxu0 0.0
    %1838 = vmatprep.subr.mxu0 0.0
    %1839 = vmatpush2.msra.mxu0 0.0
    %1840 = vmatprep.subr.mxu0 0.0
    %1841 = vmatpush2.msra.mxu0 0.0
    %1842 = vmatprep.subr.mxu0 0.0
    %1843 = vmatpush2.msra.mxu0 0.0
    %1844 = vmatprep.subr.mxu0 0.0
    %1845 = vmatpush2.msra.mxu0 0.0
    %1846 = vmatprep.subr.mxu0 0.0
    %1847 = vmatpush2.msra.mxu0 0.0
    %1848 = vmatprep.subr.mxu0 0.0
    %1849 = vmatpush2.msra.mxu0 0.0
    %1850 = vmatprep.subr.mxu0 0.0
    %1851 = vmatpush2.msra.mxu0 0.0
    %1852 = vmatprep.subr.mxu0 0.0
    %1853 = vmatpush2.msra.mxu0 0.0
    %1854 = vmatprep.subr.mxu0 0.0
    %1855 = vmatpush2.msra.mxu0 0.0
    %1856 = vmatprep.subr.mxu0 0.0
    %1857 = vmatpush2.msra.mxu0 0.0
    %1858 = vmatprep.mubr.f32.mxu0 0.0
    %1859 = vmatmul.mubr.f32.gmra.mxu0 %v1715
    %v1860 = vpop.f32.mrf.mxu0
    %v1861 = vadd.f32 0.0, %v1860
    %v1862 = vpop.f32.mrf.mxu0
    %v1863 = vadd.f32 0.0, %v1862
    %1864 = vdwg.mxu0
    %v1865 = vadd.f32 %v1719, %v1790
    %v1866 = vadd.f32 %v1720, %v1792
    %v1867 = vadd.f32 %v1721, %v1861
    %v1868 = vadd.f32 %v1722, %v1863
    %v1869 = vxor.u32 %v1865, 2147483648
    %v1870 = vmul.f32 %v1869, 1.442695
    %v1871 = vpow.pop %v1870
    %v1872 = vadd.f32 %v1871, 1.0
    %v1873 = vrcp.pop %v1872
    %v1874 = vmul.f32 1.0, %v1873
    %v1875 = vxor.u32 %v1866, 2147483648
    %v1876 = vmul.f32 %v1875, 1.442695
    %v1877 = vpow.pop %v1876
    %v1878 = vadd.f32 %v1877, 1.0
    %v1879 = vrcp.pop %v1878
    %v1880 = vmul.f32 1.0, %v1879
    %v1881 = vtanh.pop %v1867
    %v1882 = vxor.u32 %v1868, 2147483648
    %v1883 = vmul.f32 %v1882, 1.442695
    %v1884 = vpow.pop %v1883
    %v1885 = vadd.f32 %v1884, 1.0
    %v1886 = vrcp.pop %v1885
    %v1887 = vmul.f32 1.0, %v1886
    %v1888 = vld [vmem:[#allocation4] sm:$0xff]
    %v1889 = vmul.f32 %v1880, %v1888
    %v1890 = vmul.f32 %v1874, %v1881
    %v1891 = vadd.f32 %v1889, %v1890
    %v1892 = vtanh.pop %v1891
    %v1893 = vmul.f32 %v1887, %v1892
    %1894 = vst [vmem:[#allocation3] sm:$0xff] %v1893
    %1895 = vst [vmem:[#allocation4] sm:$0xff] %v1891
    %s1896 = scalar_lea.vmem [#allocation8], 56
    %1897 = vst [vmem:[%s1896] sm:$0xff] %v1893
    %v1898 = vld [vmem:[#allocation3] sm:$0xff]
    %1899 = vst [vmem:[#allocation9] sm:$0xff] %v1898
    %v1900 = vld [vmem:[#allocation4] sm:$0xff]
    %1901 = vst [vmem:[#allocation11] sm:$0xff] %v1900
    // Predicated region
    $region34: #{tpu_custom_call.1} parent=1 // pred_check
      _
    $region35: #{tpu_custom_call.1} parent=1 // pred_check_branch
      %1903 = sbr.rel (0) target = $region37
    $region36: #{tpu_custom_call.1} parent=1 // pred_region
      %s1905 = ssub.s32 1024, 1024
      %1906 = vsyncadd [#allocation7], %s1905
      %s1907 = sshll.u32 [#allocation8], 4
      %s1908 = int_to_ptr.vmem [resolvable:$true] %s1907
      %1913 = dma.vmem_to_hbm [thread:$0]  %s1908, 1024, %s6, [#allocation7], 128, 128, 8
    $region37: #{tpu_custom_call.1} parent=1 // pred_fallthru
      _
    // Predicated region
    $region38: #{tpu_custom_call.1} parent=1 // pred_check
      _
    $region39: #{tpu_custom_call.1} parent=1 // pred_check_branch
      %1915 = sbr.rel (0) target = $region41
    $region40: #{tpu_custom_call.1} parent=1 // pred_region
      %s1917 = ssub.s32 128, 128
      %1918 = vsyncadd [#allocation10], %s1917
      %s1920 = sshll.u32 [#allocation9], 4
      %s1921 = int_to_ptr.vmem [resolvable:$true] %s1920
      %1923 = dma.vmem_to_hbm [thread:$0]  %s1921, 128, %s7, [#allocation10]
    $region41: #{tpu_custom_call.1} parent=1 // pred_fallthru
      _
    // Predicated region
    $region42: #{tpu_custom_call.1} parent=1 // pred_check
      _
    $region43: #{tpu_custom_call.1} parent=1 // pred_check_branch
      %1925 = sbr.rel (0) target = $region45
    $region44: #{tpu_custom_call.1} parent=1 // pred_region
      %s1927 = ssub.s32 128, 128
      %1928 = vsyncadd [#allocation10], %s1927
      %s1930 = sshll.u32 [#allocation11], 4
      %s1931 = int_to_ptr.vmem [resolvable:$true] %s1930
      %1933 = dma.vmem_to_hbm [thread:$0]  %s1931, 128, %s8, [#allocation10]
    $region45: #{tpu_custom_call.1} parent=1 // pred_fallthru
      _
    // Predicated region
    $region46: #{tpu_custom_call.1} parent=1 // pred_check
      _
    $region47: #{tpu_custom_call.1} parent=1 // pred_check_branch
      %1935 = sbr.rel (0) target = $region49
    $region48: #{tpu_custom_call.1} parent=1 // pred_region
      %1936 = dma.done [#allocation7], 1024
    $region49: #{tpu_custom_call.1} parent=1 // pred_fallthru
      _
    // Predicated region
    $region50: #{tpu_custom_call.1} parent=1 // pred_check
      _
    $region51: #{tpu_custom_call.1} parent=1 // pred_check_branch
      %1938 = sbr.rel (0) target = $region53
    $region52: #{tpu_custom_call.1} parent=1 // pred_region
      %1939 = dma.done [#allocation10], 128
    $region53: #{tpu_custom_call.1} parent=1 // pred_fallthru
      _
    // Predicated region
    $region54: #{tpu_custom_call.1} parent=1 // pred_check
      _
    $region55: #{tpu_custom_call.1} parent=1 // pred_check_branch
      %1941 = sbr.rel (0) target = $region57
    $region56: #{tpu_custom_call.1} parent=1 // pred_region
      %1942 = dma.done [#allocation10], 128
    $region57: #{tpu_custom_call.1} parent=1 // pred_fallthru
      _
    %1943 = vsyncpa [#allocation6], 1
    %1944 = vsyncpa [#allocation7], 1
    %1945 = vsyncpa [#allocation10], 1

</llo_original>
